<compile_context>
chip_gen: v7x
topology: tpu7x:2x2x1
jax: 0.10.0
libtpu: 0.0.40
codegen_flags: <defaults>
</compile_context>

<pallas_src>
from functools import partial

import jax
import jax.numpy as jnp
from jax.experimental import pallas as pl
from jax.experimental.pallas import tpu as pltpu


# ----------------------------------------------------------------------------- kernel

def _rnet_kernel(x_ref,
                 w1a_ref, w1b_ref, w1c_ref, b1_ref, a1_ref,
                 w2_ref, b2_ref, a2_ref,
                 w3_ref, b3_ref, a3_ref,
                 w4_ref, b4_ref, a4_ref,
                 w5_ref, b5_ref,
                 o_ref):
    f32, bf16 = jnp.float32, jnp.bfloat16
    bb = x_ref.shape[0] // 16                           # batch tile

    xb = x_ref[...].astype(bf16)                        # (bb*16, 48)  lane = w*3+c

    # ---- conv1 (3x3 s1, 3->28) on the MXU: one dot per kernel row (tap) -----------
    # W1_di[3*(j+dj)+c, 28*j+o] = w1[o, c, di, dj]  (banded weight built host-side),
    # so f_di[b, r, 28j+o] = sum_{dj,c} x[b, r, j+dj, c] * w1[o, c, di, dj].
    f0 = jnp.dot(xb, w1a_ref[...], preferred_element_type=f32).reshape(bb, 16, 392)
    f1 = jnp.dot(xb, w1b_ref[...], preferred_element_type=f32).reshape(bb, 16, 392)
    f2 = jnp.dot(xb, w1c_ref[...], preferred_element_type=f32).reshape(bb, 16, 392)
    y = f0[:, 0:14] + f1[:, 1:15] + f2[:, 2:16] + b1_ref[...]   # (bb,14,392) lane=28j+o
    y = jnp.where(y > 0, y, a1_ref[...] * y)                    # PReLU1 (alpha tiled)

    # ---- maxpool1 3x3 s2: 14x14 -> 6x6 --------------------------------------------
    # rows: max of 3 shifted row-slices, then keep rows 0,2,...,10
    hm = jnp.maximum(jnp.maximum(y[:, 0:11], y[:, 1:12]), y[:, 2:13])       # (bb,11,392)
    hm = jnp.concatenate([hm[:, 2 * i:2 * i + 1] for i in range(6)], axis=1)  # (bb,6,392)
    # cols: lane groups of 28; max of 3 group-shifted slices, keep even groups
    wm = jnp.maximum(jnp.maximum(hm[:, :, 0:308], hm[:, :, 28:336]), hm[:, :, 56:364])
    p1 = jnp.concatenate([wm[:, :, 56 * j:56 * j + 28] for j in range(6)], axis=2)
    # p1: (bb, 6, 168)  rows = (b, i), lanes = j*28 + c

    # ---- conv2 (1x1, 28->48) as ONE block-diagonal MXU dot over the 6 col groups ---
    y2 = jnp.dot(p1.reshape(bb * 6, 168).astype(bf16), w2_ref[...],
                 preferred_element_type=f32) + b2_ref[...]                  # (bb*6,288)
    y2 = jnp.where(y2 > 0, y2, a2_ref[...] * y2)                            # PReLU2
    y2 = y2.reshape(bb, 6, 288)                                             # lane=48j+c

    # ---- maxpool2 3x3 s2: 6x6 -> 2x2 ------------------------------------------------
    h2 = jnp.maximum(jnp.maximum(y2[:, 0:3], y2[:, 1:4]), y2[:, 2:5])       # (bb,3,288)
    h2 = jnp.concatenate([h2[:, 0:1], h2[:, 2:3]], axis=1)                  # (bb,2,288)
    cm = jnp.maximum(jnp.maximum(h2[:, :, 0:144], h2[:, :, 48:192]), h2[:, :, 96:240])
    p2 = jnp.concatenate([cm[:, :, 0:48], cm[:, :, 96:144]], axis=2)        # (bb,2,96)

    # ---- conv3 (1x1, 48->64) over all 4 positions + NCHW flatten, one dot ----------
    # lanes of p2f = io*96 + jo*48 + c (position-major); w3 is block-diag (192,256).
    p2f = jnp.concatenate([p2[:, 0, :], p2[:, 1, :]], axis=1).astype(bf16)  # (bb,192)
    y3 = jnp.dot(p2f, w3_ref[...], preferred_element_type=f32) + b3_ref[...]  # (bb,256)
    y3 = jnp.where(y3 > 0, y3, a3_ref[...] * y3)                            # PReLU3

    # ---- fc4 (256->128), w4 pre-permuted for the (io, jo, o3) lane order ------------
    h = jnp.dot(y3.astype(bf16), w4_ref[...], preferred_element_type=f32) + b4_ref[...]
    h = jnp.where(h > 0, h, a4_ref[...] * h)                                # shared alpha

    # ---- fused heads: one lane-padded dot. col 0 = sigmoid(det), cols 1:5 = box ----
    z = jnp.dot(h.astype(bf16), w5_ref[...], preferred_element_type=f32) + b5_ref[...]
    col = jax.lax.broadcasted_iota(jnp.int32, z.shape, 1)
    o_ref[...] = jnp.where(col == 0, jax.nn.sigmoid(z), z)


# ----------------------------------------------------------------------------- weights

def _block_diag(block, n):
    r, c = block.shape
    out = jnp.zeros((r * n, c * n), block.dtype)
    for g in range(n):
        out = out.at[g * r:(g + 1) * r, g * c:(g + 1) * c].set(block)
    return out


def _prep_weights(p):
    f32, bf16 = jnp.float32, jnp.bfloat16

    # conv1 as 3 row-tap matmuls with banded weights:
    #   W1_di[3*(j+dj)+c, 28*j+o] = w1[o, c, di, dj]      (w1: (O=28, C=3, kH=3, kW=3))
    w1 = p["w1"].astype(f32)
    taps = []
    for di in range(3):
        blk = jnp.transpose(w1[:, :, di, :], (2, 1, 0)).reshape(9, 28)   # (dj*3+c, o)
        W = jnp.zeros((48, 392), f32)
        for j in range(14):
            W = W.at[3 * j:3 * j + 9, 28 * j:28 * j + 28].set(blk)
        taps.append(W.astype(bf16))
    b1 = jnp.tile(p["b1"].astype(f32), 14).reshape(1, 392)
    a1 = jnp.tile(p["a1"].astype(f32), 14).reshape(1, 392)

    # conv2 (1x1, 28->48): block-diagonal over the 6 pooled column groups
    w2m = p["w2"][:, :, 0, 0].T.astype(f32)                              # (28, 48)
    W2 = _block_diag(w2m, 6).astype(bf16)                                # (168, 288)
    b2 = jnp.tile(p["b2"].astype(f32), 6).reshape(1, 288)
    a2 = jnp.tile(p["a2"].astype(f32), 6).reshape(1, 288)

    # conv3 (1x1, 48->64): block-diagonal over the 4 (io, jo) positions
    w3m = p["w3"][:, :, 0, 0].T.astype(f32)                              # (48, 64)
    W3 = _block_diag(w3m, 4).astype(bf16)                                # (192, 256)
    b3 = jnp.tile(p["b3"].astype(f32), 4).reshape(1, 256)
    a3 = jnp.tile(p["a3"].astype(f32), 4).reshape(1, 256)

    # fc4: kernel lane L = (io*2+jo)*64 + o3  <->  PyTorch NCHW flat index o3*4+io*2+jo
    L = jnp.arange(256)
    src = (L % 64) * 4 + (L // 64)
    W4 = jnp.take(p["w4"].astype(f32), src, axis=1).T.astype(bf16)       # (256, 128)
    b4 = p["b4"].astype(f32).reshape(1, 128)
    a4 = p["a4"].astype(f32).reshape(1, 1)

    # fused det/box head, zero-padded to 8 lanes: col 0 = det, cols 1:5 = box
    W5 = jnp.concatenate([p["w51"].T, p["w52"].T, jnp.zeros((128, 3), f32)],
                         axis=1).astype(bf16)                            # (128, 8)
    b5 = jnp.concatenate([p["b51"], p["b52"], jnp.zeros((3,), f32)]).reshape(1, 8)
    return (taps[0], taps[1], taps[2], b1, a1,
            W2, b2, a2, W3, b3, a3, W4, b4, a4, W5, b5.astype(f32))


# ----------------------------------------------------------------------------- wrapper

@partial(jax.jit, static_argnames=("block_b",))
def rnet_forward(params, x_nchw, block_b=64):
    B = x_nchw.shape[0]
    bb = B if B <= block_b else block_b                  # batch tile
    Bp = ((B + bb - 1) // bb) * bb

    # NCHW -> NHWC -> lane-dense (B*16, 48): row = (b, h), lane = w*3 + c.
    x = jnp.transpose(x_nchw, (0, 2, 3, 1)).astype(jnp.float32)
    if Bp != B:
        x = jnp.pad(x, ((0, Bp - B), (0, 0), (0, 0), (0, 0)))
    x = x.reshape(Bp * 16, 48)

    weights = _prep_weights(params)

    in_specs = [pl.BlockSpec((bb * 16, 48), lambda i: (i, 0))]
    in_specs += [pl.BlockSpec(w.shape, lambda i: (0, 0)) for w in weights]  # all 2-D

    out = pl.pallas_call(
        _rnet_kernel,
        out_shape=jax.ShapeDtypeStruct((Bp, 8), jnp.float32),
        grid_spec=pltpu.PrefetchScalarGridSpec(
            num_scalar_prefetch=0,
            grid=(Bp // bb,),                            # batch grid (>=2 steps shards
            in_specs=in_specs,                           #  across v7x's two TCs)
            out_specs=pl.BlockSpec((bb, 8), lambda i: (i, 0)),
        ),
        compiler_params=pltpu.CompilerParams(
            dimension_semantics=("parallel",),
            vmem_limit_bytes=32 * 1024 * 1024,
        ),
    )(x, *weights)

    det = out[:B, 0:1]
    box = out[:B, 1:5]
    return det, box
    # TODO(synk): conv5_3 (landmark head) exists in __init__ but is never used in
    # forward(), so it is intentionally not computed.


# ----------------------------------------------------------------------------- params

def init_params(key):
    ks = jax.random.split(key, 12)
    p = {}
    # PyTorch param layouts: Conv2d weight (O, I, kH, kW); Linear weight (out, in)
    p["w1"] = jax.random.normal(ks[0], (28, 3, 3, 3), jnp.float32) * 0.1
    p["b1"] = jax.random.normal(ks[1], (28,), jnp.float32) * 0.01
    p["a1"] = jnp.full((28,), 0.25, jnp.float32)
    p["w2"] = jax.random.normal(ks[2], (48, 28, 1, 1), jnp.float32) * 0.1
    p["b2"] = jax.random.normal(ks[3], (48,), jnp.float32) * 0.01
    p["a2"] = jnp.full((48,), 0.25, jnp.float32)
    p["w3"] = jax.random.normal(ks[4], (64, 48, 1, 1), jnp.float32) * 0.1
    p["b3"] = jax.random.normal(ks[5], (64,), jnp.float32) * 0.01
    p["a3"] = jnp.full((64,), 0.25, jnp.float32)
    p["w4"] = jax.random.normal(ks[6], (128, 256), jnp.float32) * 0.05
    p["b4"] = jax.random.normal(ks[7], (128,), jnp.float32) * 0.01
    p["a4"] = jnp.full((1, 1), 0.25, jnp.float32)
    p["w51"] = jax.random.normal(ks[8], (1, 128), jnp.float32) * 0.05
    p["b51"] = jax.random.normal(ks[9], (1,), jnp.float32) * 0.01
    p["w52"] = jax.random.normal(ks[10], (4, 128), jnp.float32) * 0.05
    p["b52"] = jax.random.normal(ks[11], (4,), jnp.float32) * 0.01
    return p


# ----------------------------------------------------------------------------- reference

def rnet_reference(params, x_nchw):
    p = params
    x = jnp.transpose(x_nchw, (0, 2, 3, 1))

    def conv(x, w, b):
        w_hwio = jnp.transpose(w, (2, 3, 1, 0))
        y = jax.lax.conv_general_dilated(
            x, w_hwio, (1, 1), "VALID",
            dimension_numbers=("NHWC", "HWIO", "NHWC"),
            precision=jax.lax.Precision.HIGHEST)
        return y + b[None, None, None, :]

    def prelu(x, a):
        return jnp.where(x > 0, x, a * x)

    def pool(x):
        return jax.lax.reduce_window(x, -jnp.inf, jax.lax.max,
                                     (1, 3, 3, 1), (1, 2, 2, 1), "VALID")

    y = prelu(conv(x, p["w1"], p["b1"]), p["a1"][None, None, None, :])
    y = pool(y)
    y = prelu(conv(y, p["w2"], p["b2"]), p["a2"][None, None, None, :])
    y = pool(y)
    y = prelu(conv(y, p["w3"], p["b3"]), p["a3"][None, None, None, :])
    flat = jnp.transpose(y, (0, 3, 1, 2)).reshape(y.shape[0], -1)
    h = flat @ p["w4"].T + p["b4"]
    h = jnp.where(h > 0, h, p["a4"][0, 0] * h)
    det = jax.nn.sigmoid(h @ p["w51"].T + p["b51"])
    box = h @ p["w52"].T + p["b52"]
    return det, box


# ----------------------------------------------------------------------------- main

if __name__ == "__main__":
    key = jax.random.PRNGKey(0)
    kx, kp = jax.random.split(key)
    # 16x16 input: 16 -conv3x3-> 14 -pool-> 6 -conv1x1-> 6 -pool-> 2 -conv1x1-> 2
    # so the flatten yields exactly 64*2*2 = 256 features, matching Linear(256, 128).
    x = jax.random.normal(kx, (2, 3, 16, 16), jnp.float32)       # NCHW like PyTorch
    params = init_params(kp)

    det, box = rnet_forward(params, x)
    jax.block_until_ready((det, box))

    det_ref, box_ref = rnet_reference(params, x)
    assert det.shape == (2, 1) and box.shape == (2, 4)
    assert jnp.allclose(det, det_ref, rtol=5e-2, atol=5e-2)
    assert jnp.allclose(box, box_ref, rtol=5e-2, atol=5e-2)
    print("KERNEL_OK")
</pallas_src>

<mosaic_0001>
module attributes {stable_mosaic.version = 11 : i64} {
  func.func @_rnet_kernel(%arg0: i32, %arg1: memref<32x48xf32, #tpu.memory_space<vmem>>, %arg2: memref<48x392xbf16, #tpu.memory_space<vmem>>, %arg3: memref<48x392xbf16, #tpu.memory_space<vmem>>, %arg4: memref<48x392xbf16, #tpu.memory_space<vmem>>, %arg5: memref<1x392xf32, #tpu.memory_space<vmem>>, %arg6: memref<1x392xf32, #tpu.memory_space<vmem>>, %arg7: memref<168x288xbf16, #tpu.memory_space<vmem>>, %arg8: memref<1x288xf32, #tpu.memory_space<vmem>>, %arg9: memref<1x288xf32, #tpu.memory_space<vmem>>, %arg10: memref<192x256xbf16, #tpu.memory_space<vmem>>, %arg11: memref<1x256xf32, #tpu.memory_space<vmem>>, %arg12: memref<1x256xf32, #tpu.memory_space<vmem>>, %arg13: memref<256x128xbf16, #tpu.memory_space<vmem>>, %arg14: memref<1x128xf32, #tpu.memory_space<vmem>>, %arg15: memref<1x1xf32, #tpu.memory_space<vmem>>, %arg16: memref<128x8xbf16, #tpu.memory_space<vmem>>, %arg17: memref<1x8xf32, #tpu.memory_space<vmem>>, %arg18: memref<2x8xf32, #tpu.memory_space<vmem>>) attributes {dimension_semantics = [#tpu.dimension_semantics<parallel>], iteration_bounds = array<i64: 1>, scalar_prefetch = 0 : i64, scratch_operands = 0 : i64, tpu.core_type = #tpu.core_type<tc>, window_params = [{transform_indices = @transform_0, window_bounds = array<i64: 32, 48>}, {pipeline_mode = #tpu.pipeline_mode<synchronous>, transform_indices = @transform_1, window_bounds = array<i64: 48, 392>}, {pipeline_mode = #tpu.pipeline_mode<synchronous>, transform_indices = @transform_2, window_bounds = array<i64: 48, 392>}, {pipeline_mode = #tpu.pipeline_mode<synchronous>, transform_indices = @transform_3, window_bounds = array<i64: 48, 392>}, {pipeline_mode = #tpu.pipeline_mode<synchronous>, transform_indices = @transform_4, window_bounds = array<i64: 1, 392>}, {pipeline_mode = #tpu.pipeline_mode<synchronous>, transform_indices = @transform_5, window_bounds = array<i64: 1, 392>}, {pipeline_mode = #tpu.pipeline_mode<synchronous>, transform_indices = @transform_6, window_bounds = array<i64: 168, 288>}, {pipeline_mode = #tpu.pipeline_mode<synchronous>, transform_indices = @transform_7, window_bounds = array<i64: 1, 288>}, {pipeline_mode = #tpu.pipeline_mode<synchronous>, transform_indices = @transform_8, window_bounds = array<i64: 1, 288>}, {pipeline_mode = #tpu.pipeline_mode<synchronous>, transform_indices = @transform_9, window_bounds = array<i64: 192, 256>}, {pipeline_mode = #tpu.pipeline_mode<synchronous>, transform_indices = @transform_10, window_bounds = array<i64: 1, 256>}, {pipeline_mode = #tpu.pipeline_mode<synchronous>, transform_indices = @transform_11, window_bounds = array<i64: 1, 256>}, {pipeline_mode = #tpu.pipeline_mode<synchronous>, transform_indices = @transform_12, window_bounds = array<i64: 256, 128>}, {pipeline_mode = #tpu.pipeline_mode<synchronous>, transform_indices = @transform_13, window_bounds = array<i64: 1, 128>}, {pipeline_mode = #tpu.pipeline_mode<synchronous>, transform_indices = @transform_14, window_bounds = array<i64: 1, 1>}, {pipeline_mode = #tpu.pipeline_mode<synchronous>, transform_indices = @transform_15, window_bounds = array<i64: 128, 8>}, {pipeline_mode = #tpu.pipeline_mode<synchronous>, transform_indices = @transform_16, window_bounds = array<i64: 1, 8>}, {transform_indices = @transform_17, window_bounds = array<i64: 2, 8>}]} {
    %c0 = arith.constant 0 : index
    %c0_0 = arith.constant 0 : index
    %0 = vector.load %arg1[%c0, %c0_0] : memref<32x48xf32, #tpu.memory_space<vmem>>, vector<32x48xf32>
    %1 = arith.truncf %0 : vector<32x48xf32> to vector<32x48xbf16>
    %c0_1 = arith.constant 0 : index
    %c0_2 = arith.constant 0 : index
    %2 = vector.load %arg2[%c0_1, %c0_2] : memref<48x392xbf16, #tpu.memory_space<vmem>>, vector<48x392xbf16>
    %cst = arith.constant dense<0.000000e+00> : vector<32x392xf32>
    %3 = tpu.matmul %1, %2, %cst {dimension_numbers = #tpu.dot_dimension_numbers<[1], [0], [0], [1], [0, 0, 1, 1], [], []>} : vector<32x48xbf16>, vector<48x392xbf16>, vector<32x392xf32> -> vector<32x392xf32>
    %4 = vector.shape_cast %3 : vector<32x392xf32> to vector<2x16x392xf32>
    %c0_3 = arith.constant 0 : index
    %c0_4 = arith.constant 0 : index
    %5 = vector.load %arg3[%c0_3, %c0_4] : memref<48x392xbf16, #tpu.memory_space<vmem>>, vector<48x392xbf16>
    %cst_5 = arith.constant dense<0.000000e+00> : vector<32x392xf32>
    %6 = tpu.matmul %1, %5, %cst_5 {dimension_numbers = #tpu.dot_dimension_numbers<[1], [0], [0], [1], [0, 0, 1, 1], [], []>} : vector<32x48xbf16>, vector<48x392xbf16>, vector<32x392xf32> -> vector<32x392xf32>
    %7 = vector.shape_cast %6 : vector<32x392xf32> to vector<2x16x392xf32>
    %c0_6 = arith.constant 0 : index
    %c0_7 = arith.constant 0 : index
    %8 = vector.load %arg4[%c0_6, %c0_7] : memref<48x392xbf16, #tpu.memory_space<vmem>>, vector<48x392xbf16>
    %cst_8 = arith.constant dense<0.000000e+00> : vector<32x392xf32>
    %9 = tpu.matmul %1, %8, %cst_8 {dimension_numbers = #tpu.dot_dimension_numbers<[1], [0], [0], [1], [0, 0, 1, 1], [], []>} : vector<32x48xbf16>, vector<48x392xbf16>, vector<32x392xf32> -> vector<32x392xf32>
    %10 = vector.shape_cast %9 : vector<32x392xf32> to vector<2x16x392xf32>
    %11 = vector.extract_strided_slice %4 {offsets = [0, 0, 0], sizes = [2, 14, 392], strides = [1, 1, 1]} : vector<2x16x392xf32> to vector<2x14x392xf32>
    %12 = vector.extract_strided_slice %7 {offsets = [0, 1, 0], sizes = [2, 14, 392], strides = [1, 1, 1]} : vector<2x16x392xf32> to vector<2x14x392xf32>
    %13 = arith.addf %11, %12 : vector<2x14x392xf32>
    %14 = vector.extract_strided_slice %10 {offsets = [0, 2, 0], sizes = [2, 14, 392], strides = [1, 1, 1]} : vector<2x16x392xf32> to vector<2x14x392xf32>
    %15 = arith.addf %13, %14 : vector<2x14x392xf32>
    %c0_9 = arith.constant 0 : index
    %c0_10 = arith.constant 0 : index
    %16 = vector.load %arg5[%c0_9, %c0_10] : memref<1x392xf32, #tpu.memory_space<vmem>>, vector<1x392xf32>
    %17 = vector.shape_cast %16 : vector<1x392xf32> to vector<1x1x392xf32>
    %18 = vector.broadcast %17 : vector<1x1x392xf32> to vector<2x14x392xf32>
    %19 = arith.addf %15, %18 : vector<2x14x392xf32>
    %cst_11 = arith.constant 0.000000e+00 : f32
    %20 = vector.broadcast %cst_11 : f32 to vector<2x14x392xf32>
    %21 = arith.cmpf ogt, %19, %20 : vector<2x14x392xf32>
    %c0_12 = arith.constant 0 : index
    %c0_13 = arith.constant 0 : index
    %22 = vector.load %arg6[%c0_12, %c0_13] : memref<1x392xf32, #tpu.memory_space<vmem>>, vector<1x392xf32>
    %23 = vector.shape_cast %22 : vector<1x392xf32> to vector<1x1x392xf32>
    %24 = vector.broadcast %23 : vector<1x1x392xf32> to vector<2x14x392xf32>
    %25 = arith.mulf %24, %19 : vector<2x14x392xf32>
    %26 = arith.select %21, %19, %25 : vector<2x14x392xi1>, vector<2x14x392xf32>
    %27 = vector.extract_strided_slice %26 {offsets = [0, 0, 0], sizes = [2, 11, 392], strides = [1, 1, 1]} : vector<2x14x392xf32> to vector<2x11x392xf32>
    %28 = vector.extract_strided_slice %26 {offsets = [0, 1, 0], sizes = [2, 11, 392], strides = [1, 1, 1]} : vector<2x14x392xf32> to vector<2x11x392xf32>
    %29 = arith.maximumf %27, %28 : vector<2x11x392xf32>
    %30 = vector.extract_strided_slice %26 {offsets = [0, 2, 0], sizes = [2, 11, 392], strides = [1, 1, 1]} : vector<2x14x392xf32> to vector<2x11x392xf32>
    %31 = arith.maximumf %29, %30 : vector<2x11x392xf32>
    %32 = vector.extract_strided_slice %31 {offsets = [0, 0, 0], sizes = [2, 1, 392], strides = [1, 1, 1]} : vector<2x11x392xf32> to vector<2x1x392xf32>
    %33 = vector.extract_strided_slice %31 {offsets = [0, 2, 0], sizes = [2, 1, 392], strides = [1, 1, 1]} : vector<2x11x392xf32> to vector<2x1x392xf32>
    %34 = vector.extract_strided_slice %31 {offsets = [0, 4, 0], sizes = [2, 1, 392], strides = [1, 1, 1]} : vector<2x11x392xf32> to vector<2x1x392xf32>
    %35 = vector.extract_strided_slice %31 {offsets = [0, 6, 0], sizes = [2, 1, 392], strides = [1, 1, 1]} : vector<2x11x392xf32> to vector<2x1x392xf32>
    %36 = vector.extract_strided_slice %31 {offsets = [0, 8, 0], sizes = [2, 1, 392], strides = [1, 1, 1]} : vector<2x11x392xf32> to vector<2x1x392xf32>
    %37 = vector.extract_strided_slice %31 {offsets = [0, 10, 0], sizes = [2, 1, 392], strides = [1, 1, 1]} : vector<2x11x392xf32> to vector<2x1x392xf32>
    %38 = tpu.concatenate %32, %33, %34, %35, %36, %37 in 1 : vector<2x1x392xf32>, vector<2x1x392xf32>, vector<2x1x392xf32>, vector<2x1x392xf32>, vector<2x1x392xf32>, vector<2x1x392xf32> -> vector<2x6x392xf32>
    %39 = vector.extract_strided_slice %38 {offsets = [0, 0, 0], sizes = [2, 6, 308], strides = [1, 1, 1]} : vector<2x6x392xf32> to vector<2x6x308xf32>
    %40 = vector.extract_strided_slice %38 {offsets = [0, 0, 28], sizes = [2, 6, 308], strides = [1, 1, 1]} : vector<2x6x392xf32> to vector<2x6x308xf32>
    %41 = arith.maximumf %39, %40 : vector<2x6x308xf32>
    %42 = vector.extract_strided_slice %38 {offsets = [0, 0, 56], sizes = [2, 6, 308], strides = [1, 1, 1]} : vector<2x6x392xf32> to vector<2x6x308xf32>
    %43 = arith.maximumf %41, %42 : vector<2x6x308xf32>
    %44 = vector.extract_strided_slice %43 {offsets = [0, 0, 0], sizes = [2, 6, 28], strides = [1, 1, 1]} : vector<2x6x308xf32> to vector<2x6x28xf32>
    %45 = vector.extract_strided_slice %43 {offsets = [0, 0, 56], sizes = [2, 6, 28], strides = [1, 1, 1]} : vector<2x6x308xf32> to vector<2x6x28xf32>
    %46 = vector.extract_strided_slice %43 {offsets = [0, 0, 112], sizes = [2, 6, 28], strides = [1, 1, 1]} : vector<2x6x308xf32> to vector<2x6x28xf32>
    %47 = vector.extract_strided_slice %43 {offsets = [0, 0, 168], sizes = [2, 6, 28], strides = [1, 1, 1]} : vector<2x6x308xf32> to vector<2x6x28xf32>
    %48 = vector.extract_strided_slice %43 {offsets = [0, 0, 224], sizes = [2, 6, 28], strides = [1, 1, 1]} : vector<2x6x308xf32> to vector<2x6x28xf32>
    %49 = vector.extract_strided_slice %43 {offsets = [0, 0, 280], sizes = [2, 6, 28], strides = [1, 1, 1]} : vector<2x6x308xf32> to vector<2x6x28xf32>
    %50 = tpu.concatenate %44, %45, %46, %47, %48, %49 in 2 : vector<2x6x28xf32>, vector<2x6x28xf32>, vector<2x6x28xf32>, vector<2x6x28xf32>, vector<2x6x28xf32>, vector<2x6x28xf32> -> vector<2x6x168xf32>
    %51 = vector.shape_cast %50 : vector<2x6x168xf32> to vector<12x168xf32>
    %52 = arith.truncf %51 : vector<12x168xf32> to vector<12x168xbf16>
    %c0_14 = arith.constant 0 : index
    %c0_15 = arith.constant 0 : index
    %53 = vector.load %arg7[%c0_14, %c0_15] : memref<168x288xbf16, #tpu.memory_space<vmem>>, vector<168x288xbf16>
    %cst_16 = arith.constant dense<0.000000e+00> : vector<12x288xf32>
    %54 = tpu.matmul %52, %53, %cst_16 {dimension_numbers = #tpu.dot_dimension_numbers<[1], [0], [0], [1], [0, 0, 1, 1], [], []>} : vector<12x168xbf16>, vector<168x288xbf16>, vector<12x288xf32> -> vector<12x288xf32>
    %c0_17 = arith.constant 0 : index
    %c0_18 = arith.constant 0 : index
    %55 = vector.load %arg8[%c0_17, %c0_18] : memref<1x288xf32, #tpu.memory_space<vmem>>, vector<1x288xf32>
    %56 = vector.broadcast %55 : vector<1x288xf32> to vector<12x288xf32>
    %57 = arith.addf %54, %56 : vector<12x288xf32>
    %cst_19 = arith.constant 0.000000e+00 : f32
    %58 = vector.broadcast %cst_19 : f32 to vector<12x288xf32>
    %59 = arith.cmpf ogt, %57, %58 : vector<12x288xf32>
    %c0_20 = arith.constant 0 : index
    %c0_21 = arith.constant 0 : index
    %60 = vector.load %arg9[%c0_20, %c0_21] : memref<1x288xf32, #tpu.memory_space<vmem>>, vector<1x288xf32>
    %61 = vector.broadcast %60 : vector<1x288xf32> to vector<12x288xf32>
    %62 = arith.mulf %61, %57 : vector<12x288xf32>
    %63 = arith.select %59, %57, %62 : vector<12x288xi1>, vector<12x288xf32>
    %64 = vector.shape_cast %63 : vector<12x288xf32> to vector<2x6x288xf32>
    %65 = vector.extract_strided_slice %64 {offsets = [0, 0, 0], sizes = [2, 3, 288], strides = [1, 1, 1]} : vector<2x6x288xf32> to vector<2x3x288xf32>
    %66 = vector.extract_strided_slice %64 {offsets = [0, 1, 0], sizes = [2, 3, 288], strides = [1, 1, 1]} : vector<2x6x288xf32> to vector<2x3x288xf32>
    %67 = arith.maximumf %65, %66 : vector<2x3x288xf32>
    %68 = vector.extract_strided_slice %64 {offsets = [0, 2, 0], sizes = [2, 3, 288], strides = [1, 1, 1]} : vector<2x6x288xf32> to vector<2x3x288xf32>
    %69 = arith.maximumf %67, %68 : vector<2x3x288xf32>
    %70 = vector.extract_strided_slice %69 {offsets = [0, 0, 0], sizes = [2, 1, 288], strides = [1, 1, 1]} : vector<2x3x288xf32> to vector<2x1x288xf32>
    %71 = vector.extract_strided_slice %69 {offsets = [0, 2, 0], sizes = [2, 1, 288], strides = [1, 1, 1]} : vector<2x3x288xf32> to vector<2x1x288xf32>
    %72 = tpu.concatenate %70, %71 in 1 : vector<2x1x288xf32>, vector<2x1x288xf32> -> vector<2x2x288xf32>
    %73 = vector.extract_strided_slice %72 {offsets = [0, 0, 0], sizes = [2, 2, 144], strides = [1, 1, 1]} : vector<2x2x288xf32> to vector<2x2x144xf32>
    %74 = vector.extract_strided_slice %72 {offsets = [0, 0, 48], sizes = [2, 2, 144], strides = [1, 1, 1]} : vector<2x2x288xf32> to vector<2x2x144xf32>
    %75 = arith.maximumf %73, %74 : vector<2x2x144xf32>
    %76 = vector.extract_strided_slice %72 {offsets = [0, 0, 96], sizes = [2, 2, 144], strides = [1, 1, 1]} : vector<2x2x288xf32> to vector<2x2x144xf32>
    %77 = arith.maximumf %75, %76 : vector<2x2x144xf32>
    %78 = vector.extract_strided_slice %77 {offsets = [0, 0, 0], sizes = [2, 2, 48], strides = [1, 1, 1]} : vector<2x2x144xf32> to vector<2x2x48xf32>
    %79 = vector.extract_strided_slice %77 {offsets = [0, 0, 96], sizes = [2, 2, 48], strides = [1, 1, 1]} : vector<2x2x144xf32> to vector<2x2x48xf32>
    %80 = tpu.concatenate %78, %79 in 2 : vector<2x2x48xf32>, vector<2x2x48xf32> -> vector<2x2x96xf32>
    %81 = vector.extract_strided_slice %80 {offsets = [0, 0, 0], sizes = [2, 1, 96], strides = [1, 1, 1]} : vector<2x2x96xf32> to vector<2x1x96xf32>
    %82 = vector.shape_cast %81 : vector<2x1x96xf32> to vector<2x96xf32>
    %83 = vector.extract_strided_slice %80 {offsets = [0, 1, 0], sizes = [2, 1, 96], strides = [1, 1, 1]} : vector<2x2x96xf32> to vector<2x1x96xf32>
    %84 = vector.shape_cast %83 : vector<2x1x96xf32> to vector<2x96xf32>
    %85 = tpu.concatenate %82, %84 in 1 : vector<2x96xf32>, vector<2x96xf32> -> vector<2x192xf32>
    %86 = arith.truncf %85 : vector<2x192xf32> to vector<2x192xbf16>
    %c0_22 = arith.constant 0 : index
    %c0_23 = arith.constant 0 : index
    %87 = vector.load %arg10[%c0_22, %c0_23] : memref<192x256xbf16, #tpu.memory_space<vmem>>, vector<192x256xbf16>
    %cst_24 = arith.constant dense<0.000000e+00> : vector<2x256xf32>
    %88 = tpu.matmul %86, %87, %cst_24 {dimension_numbers = #tpu.dot_dimension_numbers<[1], [0], [0], [1], [0, 0, 1, 1], [], []>} : vector<2x192xbf16>, vector<192x256xbf16>, vector<2x256xf32> -> vector<2x256xf32>
    %c0_25 = arith.constant 0 : index
    %c0_26 = arith.constant 0 : index
    %89 = vector.load %arg11[%c0_25, %c0_26] : memref<1x256xf32, #tpu.memory_space<vmem>>, vector<1x256xf32>
    %90 = vector.broadcast %89 : vector<1x256xf32> to vector<2x256xf32>
    %91 = arith.addf %88, %90 : vector<2x256xf32>
    %cst_27 = arith.constant 0.000000e+00 : f32
    %92 = vector.broadcast %cst_27 : f32 to vector<2x256xf32>
    %93 = arith.cmpf ogt, %91, %92 : vector<2x256xf32>
    %c0_28 = arith.constant 0 : index
    %c0_29 = arith.constant 0 : index
    %94 = vector.load %arg12[%c0_28, %c0_29] : memref<1x256xf32, #tpu.memory_space<vmem>>, vector<1x256xf32>
    %95 = vector.broadcast %94 : vector<1x256xf32> to vector<2x256xf32>
    %96 = arith.mulf %95, %91 : vector<2x256xf32>
    %97 = arith.select %93, %91, %96 : vector<2x256xi1>, vector<2x256xf32>
    %98 = arith.truncf %97 : vector<2x256xf32> to vector<2x256xbf16>
    %c0_30 = arith.constant 0 : index
    %c0_31 = arith.constant 0 : index
    %99 = vector.load %arg13[%c0_30, %c0_31] : memref<256x128xbf16, #tpu.memory_space<vmem>>, vector<256x128xbf16>
    %cst_32 = arith.constant dense<0.000000e+00> : vector<2x128xf32>
    %100 = tpu.matmul %98, %99, %cst_32 {dimension_numbers = #tpu.dot_dimension_numbers<[1], [0], [0], [1], [0, 0, 1, 1], [], []>} : vector<2x256xbf16>, vector<256x128xbf16>, vector<2x128xf32> -> vector<2x128xf32>
    %c0_33 = arith.constant 0 : index
    %c0_34 = arith.constant 0 : index
    %101 = vector.load %arg14[%c0_33, %c0_34] : memref<1x128xf32, #tpu.memory_space<vmem>>, vector<1x128xf32>
    %102 = vector.broadcast %101 : vector<1x128xf32> to vector<2x128xf32>
    %103 = arith.addf %100, %102 : vector<2x128xf32>
    %cst_35 = arith.constant 0.000000e+00 : f32
    %104 = vector.broadcast %cst_35 : f32 to vector<2x128xf32>
    %105 = arith.cmpf ogt, %103, %104 : vector<2x128xf32>
    %c0_36 = arith.constant 0 : index
    %c0_37 = arith.constant 0 : index
    %106 = vector.load %arg15[%c0_36, %c0_37] : memref<1x1xf32, #tpu.memory_space<vmem>>, vector<1x1xf32>
    %107 = vector.broadcast %106 : vector<1x1xf32> to vector<2x128xf32>
    %108 = arith.mulf %107, %103 : vector<2x128xf32>
    %109 = arith.select %105, %103, %108 : vector<2x128xi1>, vector<2x128xf32>
    %110 = arith.truncf %109 : vector<2x128xf32> to vector<2x128xbf16>
    %c0_38 = arith.constant 0 : index
    %c0_39 = arith.constant 0 : index
    %111 = vector.load %arg16[%c0_38, %c0_39] : memref<128x8xbf16, #tpu.memory_space<vmem>>, vector<128x8xbf16>
    %cst_40 = arith.constant dense<0.000000e+00> : vector<2x8xf32>
    %112 = tpu.matmul %110, %111, %cst_40 {dimension_numbers = #tpu.dot_dimension_numbers<[1], [0], [0], [1], [0, 0, 1, 1], [], []>} : vector<2x128xbf16>, vector<128x8xbf16>, vector<2x8xf32> -> vector<2x8xf32>
    %c0_41 = arith.constant 0 : index
    %c0_42 = arith.constant 0 : index
    %113 = vector.load %arg17[%c0_41, %c0_42] : memref<1x8xf32, #tpu.memory_space<vmem>>, vector<1x8xf32>
    %114 = vector.broadcast %113 : vector<1x8xf32> to vector<2x8xf32>
    %115 = arith.addf %112, %114 : vector<2x8xf32>
    %116 = tpu.iota {dimensions = array<i32: 1>} : vector<2x8xi32>
    %c0_i32 = arith.constant 0 : i32
    %117 = vector.broadcast %c0_i32 : i32 to vector<2x8xi32>
    %118 = arith.cmpi eq, %116, %117 : vector<2x8xi32>
    %119 = arith.negf %115 : vector<2x8xf32>
    %120 = math.exp %119 : vector<2x8xf32>
    %cst_43 = arith.constant 1.000000e+00 : f32
    %121 = vector.broadcast %cst_43 : f32 to vector<2x8xf32>
    %122 = arith.addf %121, %120 : vector<2x8xf32>
    %123 = arith.divf %121, %122 : vector<2x8xf32>
    %124 = arith.select %118, %123, %115 : vector<2x8xi1>, vector<2x8xf32>
    %c0_44 = arith.constant 0 : index
    %c0_45 = arith.constant 0 : index
    %125 = vector.load %arg18[%c0_44, %c0_45] : memref<2x8xf32, #tpu.memory_space<vmem>>, vector<2x8xf32>
    tpu.vector_store %arg18[%c0_44, %c0_45], %124 {strides = array<i32>} : memref<2x8xf32, #tpu.memory_space<vmem>>, vector<2x8xf32>,
    return
  }
  func.func @transform_0(%arg0: i32) -> (i32, i32) {
    %c0_i32 = arith.constant 0 : i32
    %c0_i32_0 = arith.constant 0 : i32
    return %arg0, %c0_i32 : i32, i32
  }
  func.func @transform_1(%arg0: i32) -> (i32, i32) {
    %c0_i32 = arith.constant 0 : i32
    %c0_i32_0 = arith.constant 0 : i32
    %c0_i32_1 = arith.constant 0 : i32
    return %c0_i32, %c0_i32_0 : i32, i32
  }
  func.func @transform_2(%arg0: i32) -> (i32, i32) {
    %c0_i32 = arith.constant 0 : i32
    %c0_i32_0 = arith.constant 0 : i32
    %c0_i32_1 = arith.constant 0 : i32
    return %c0_i32, %c0_i32_0 : i32, i32
  }
  func.func @transform_3(%arg0: i32) -> (i32, i32) {
    %c0_i32 = arith.constant 0 : i32
    %c0_i32_0 = arith.constant 0 : i32
    %c0_i32_1 = arith.constant 0 : i32
    return %c0_i32, %c0_i32_0 : i32, i32
  }
  func.func @transform_4(%arg0: i32) -> (i32, i32) {
    %c0_i32 = arith.constant 0 : i32
    %c0_i32_0 = arith.constant 0 : i32
    %c0_i32_1 = arith.constant 0 : i32
    return %c0_i32, %c0_i32_0 : i32, i32
  }
  func.func @transform_5(%arg0: i32) -> (i32, i32) {
    %c0_i32 = arith.constant 0 : i32
    %c0_i32_0 = arith.constant 0 : i32
    %c0_i32_1 = arith.constant 0 : i32
    return %c0_i32, %c0_i32_0 : i32, i32
  }
  func.func @transform_6(%arg0: i32) -> (i32, i32) {
    %c0_i32 = arith.constant 0 : i32
    %c0_i32_0 = arith.constant 0 : i32
    %c0_i32_1 = arith.constant 0 : i32
    return %c0_i32, %c0_i32_0 : i32, i32
  }
  func.func @transform_7(%arg0: i32) -> (i32, i32) {
    %c0_i32 = arith.constant 0 : i32
    %c0_i32_0 = arith.constant 0 : i32
    %c0_i32_1 = arith.constant 0 : i32
    return %c0_i32, %c0_i32_0 : i32, i32
  }
  func.func @transform_8(%arg0: i32) -> (i32, i32) {
    %c0_i32 = arith.constant 0 : i32
    %c0_i32_0 = arith.constant 0 : i32
    %c0_i32_1 = arith.constant 0 : i32
    return %c0_i32, %c0_i32_0 : i32, i32
  }
  func.func @transform_9(%arg0: i32) -> (i32, i32) {
    %c0_i32 = arith.constant 0 : i32
    %c0_i32_0 = arith.constant 0 : i32
    %c0_i32_1 = arith.constant 0 : i32
    return %c0_i32, %c0_i32_0 : i32, i32
  }
  func.func @transform_10(%arg0: i32) -> (i32, i32) {
    %c0_i32 = arith.constant 0 : i32
    %c0_i32_0 = arith.constant 0 : i32
    %c0_i32_1 = arith.constant 0 : i32
    return %c0_i32, %c0_i32_0 : i32, i32
  }
  func.func @transform_11(%arg0: i32) -> (i32, i32) {
    %c0_i32 = arith.constant 0 : i32
    %c0_i32_0 = arith.constant 0 : i32
    %c0_i32_1 = arith.constant 0 : i32
    return %c0_i32, %c0_i32_0 : i32, i32
  }
  func.func @transform_12(%arg0: i32) -> (i32, i32) {
    %c0_i32 = arith.constant 0 : i32
    %c0_i32_0 = arith.constant 0 : i32
    %c0_i32_1 = arith.constant 0 : i32
    return %c0_i32, %c0_i32_0 : i32, i32
  }
  func.func @transform_13(%arg0: i32) -> (i32, i32) {
    %c0_i32 = arith.constant 0 : i32
    %c0_i32_0 = arith.constant 0 : i32
    %c0_i32_1 = arith.constant 0 : i32
    return %c0_i32, %c0_i32_0 : i32, i32
  }
  func.func @transform_14(%arg0: i32) -> (i32, i32) {
    %c0_i32 = arith.constant 0 : i32
    %c0_i32_0 = arith.constant 0 : i32
    %c0_i32_1 = arith.constant 0 : i32
    return %c0_i32, %c0_i32_0 : i32, i32
  }
  func.func @transform_15(%arg0: i32) -> (i32, i32) {
    %c0_i32 = arith.constant 0 : i32
    %c0_i32_0 = arith.constant 0 : i32
    %c0_i32_1 = arith.constant 0 : i32
    return %c0_i32, %c0_i32_0 : i32, i32
  }
  func.func @transform_16(%arg0: i32) -> (i32, i32) {
    %c0_i32 = arith.constant 0 : i32
    %c0_i32_0 = arith.constant 0 : i32
    %c0_i32_1 = arith.constant 0 : i32
    return %c0_i32, %c0_i32_0 : i32, i32
  }
  func.func @transform_17(%arg0: i32) -> (i32, i32) {
    %c0_i32 = arith.constant 0 : i32
    %c0_i32_0 = arith.constant 0 : i32
    return %arg0, %c0_i32 : i32, i32
  }
}

</mosaic_0001>

<llo_original>
// kernel: tile.33
$region0: #{tile.33}
  #allocation0 [shape = 's32[1]{0}', space=sflag, size = 0x4, scoped, tag = 'scoped memory for tile.33']
  %s0 = inlined_call_operand.vmem [shape: f32[28], index: 0, kind: input, shape index: {}]
  %s1 = inlined_call_operand.vmem [shape: f32[14,28], index: 1, kind: output, shape index: {}]
  // Predicated region
  $region2: #{tile.33} parent=0 // pred_check
    _
  $region3: #{tile.33} parent=0 // pred_check_branch
    %3 = sbr.rel (0) target = $region5
  $region4: #{tile.33} parent=0 // pred_region
    _
  $region5: #{tile.33} parent=0 // pred_fallthru
    _
  %v4 = vld [vmem:[%s0] ss:$0 sm:$0xff]
  %5 = vst [vmem:[%s1] sm:$0xff] %v4
  %s6 = scalar_lea.vmem %s1, 8
  %7 = vst [vmem:[%s6] sm:$0xff] %v4

// kernel: tile.34
$region0: #{tile.34}
  %s0 = inlined_call_operand.vmem [shape: f32[14,28], index: 0, kind: input, shape index: {}]
  %s1 = inlined_call_operand.vmem [shape: f32[1,392], index: 1, kind: output, shape index: {}]
  $region1: #{tile.34} parent=0
    #allocation0 [shape = 'u8[16384]{0}', space=vmem, size = 0x4000, scoped, tag = 'scoped mem for output reshape']
    %v2 = vld [vmem:[%s0] sm:$0x1]
    %vm3 = vcmask 228352
    %4 = vst.msk [vmem:[#allocation0] sm:$0x1] %vm3, %v2
    %s5 = scalar_lea.vmem %s0, 9
    %v6 = vld [vmem:[%s5] sm:$0x1]
    %s7 = scalar_lea.vmem %s0, 9
    %v8 = vld [vmem:[%s7] sm:$0x1]
    %vm9 = vcmask 31744
    %v10 = vsel %vm9, %v8, %v6
    %11 = vrot.lane.b32.xlu0 %v10, 124
    %v12 = vpop.permute.xlu0 %11
    %vm13 = vcmask 195584
    %s14 = scalar_lea.vmem [#allocation0], 16
    %15 = vst.msk [vmem:[%s14] sm:$0x1] %vm13, %v12
    %vm16 = vcmask 1048544
    %s17 = scalar_lea.vmem [#allocation0], 8
    %18 = vst.msk [vmem:[%s17] sm:$0x1] %vm16, %v12
    %s19 = scalar_lea.vmem %s0, 4
    %v20 = vld [vmem:[%s19] sm:$0x1]
    %s21 = scalar_lea.vmem %s0, 4
    %v22 = vld [vmem:[%s21] sm:$0x1]
    %vm23 = vcmask 130048
    %v24 = vsel %vm23, %v22, %v20
    %25 = vrot.lane.b32.xlu0 %v24, 112
    %v26 = vpop.permute.xlu0 %25
    %vm27 = vcmask 97280
    %s28 = scalar_lea.vmem [#allocation0], 8
    %29 = vst.msk [vmem:[%s28] sm:$0x1] %vm27, %v26
    %vm30 = vcmask 1048448
    %31 = vst.msk [vmem:[#allocation0] sm:$0x1] %vm30, %v26
    %s32 = scalar_lea.vmem %s0, 13
    %v33 = vld [vmem:[%s32] sm:$0x1]
    %s34 = scalar_lea.vmem %s0, 13
    %v35 = vld [vmem:[%s34] sm:$0x1]
    %vm36 = vcmask 162816
    %v37 = vsel %vm36, %v35, %v33
    %38 = vrot.lane.b32.xlu0 %v37, 108
    %v39 = vpop.permute.xlu0 %38
    %vm40 = vcmask 64512
    %s41 = scalar_lea.vmem [#allocation0], 24
    %42 = vst.msk [vmem:[%s41] sm:$0x1] %vm40, %v39
    %vm43 = vcmask 1048416
    %s44 = scalar_lea.vmem [#allocation0], 16
    %45 = vst.msk [vmem:[%s44] sm:$0x1] %vm43, %v39
    %s46 = scalar_lea.vmem %s0, 8
    %v47 = vld [vmem:[%s46] sm:$0x1]
    %48 = vrot.lane.b32.xlu0 %v47, 96
    %v49 = vpop.permute.xlu0 %48
    %vm50 = vcmask 1015552
    %s51 = scalar_lea.vmem [#allocation0], 8
    %52 = vst.msk [vmem:[%s51] sm:$0x1] %vm50, %v49
    %s53 = scalar_lea.vmem %s0, 3
    %v54 = vld [vmem:[%s53] sm:$0x1]
    %55 = vrot.lane.b32.xlu0 %v54, 84
    %v56 = vpop.permute.xlu0 %55
    %vm57 = vcmask 917152
    %58 = vst.msk [vmem:[#allocation0] sm:$0x1] %vm57, %v56
    %s59 = scalar_lea.vmem %s0, 12
    %v60 = vld [vmem:[%s59] sm:$0x1]
    %61 = vrot.lane.b32.xlu0 %v60, 80
    %v62 = vpop.permute.xlu0 %61
    %vm63 = vcmask 884352
    %s64 = scalar_lea.vmem [#allocation0], 16
    %65 = vst.msk [vmem:[%s64] sm:$0x1] %vm63, %v62
    %s66 = scalar_lea.vmem %s0, 7
    %v67 = vld [vmem:[%s66] sm:$0x1]
    %68 = vrot.lane.b32.xlu0 %v67, 68
    %v69 = vpop.permute.xlu0 %68
    %vm70 = vcmask 785952
    %s71 = scalar_lea.vmem [#allocation0], 8
    %72 = vst.msk [vmem:[%s71] sm:$0x1] %vm70, %v69
    %s73 = scalar_lea.vmem %s0, 2
    %v74 = vld [vmem:[%s73] sm:$0x1]
    %75 = vrot.lane.b32.xlu0 %v74, 56
    %v76 = vpop.permute.xlu0 %75
    %vm77 = vcmask 687552
    %78 = vst.msk [vmem:[#allocation0] sm:$0x1] %vm77, %v76
    %s79 = scalar_lea.vmem %s0, 11
    %v80 = vld [vmem:[%s79] sm:$0x1]
    %81 = vrot.lane.b32.xlu0 %v80, 52
    %v82 = vpop.permute.xlu0 %81
    %vm83 = vcmask 654752
    %s84 = scalar_lea.vmem [#allocation0], 16
    %85 = vst.msk [vmem:[%s84] sm:$0x1] %vm83, %v82
    %s86 = scalar_lea.vmem %s0, 6
    %v87 = vld [vmem:[%s86] sm:$0x1]
    %88 = vrot.lane.b32.xlu0 %v87, 40
    %v89 = vpop.permute.xlu0 %88
    %vm90 = vcmask 556352
    %s91 = scalar_lea.vmem [#allocation0], 8
    %92 = vst.msk [vmem:[%s91] sm:$0x1] %vm90, %v89
    %s93 = scalar_lea.vmem %s0, 1
    %v94 = vld [vmem:[%s93] sm:$0x1]
    %95 = vrot.lane.b32.xlu0 %v94, 28
    %v96 = vpop.permute.xlu0 %95
    %vm97 = vcmask 457952
    %98 = vst.msk [vmem:[#allocation0] sm:$0x1] %vm97, %v96
    %s99 = scalar_lea.vmem %s0, 10
    %v100 = vld [vmem:[%s99] sm:$0x1]
    %101 = vrot.lane.b32.xlu0 %v100, 24
    %v102 = vpop.permute.xlu0 %101
    %vm103 = vcmask 425152
    %s104 = scalar_lea.vmem [#allocation0], 16
    %105 = vst.msk [vmem:[%s104] sm:$0x1] %vm103, %v102
    %s106 = scalar_lea.vmem %s0, 5
    %v107 = vld [vmem:[%s106] sm:$0x1]
    %108 = vrot.lane.b32.xlu0 %v107, 12
    %v109 = vpop.permute.xlu0 %108
    %vm110 = vcmask 326752
    %s111 = scalar_lea.vmem [#allocation0], 8
    %112 = vst.msk [vmem:[%s111] sm:$0x1] %vm110, %v109
    %s114 = sshllo.u32 0, 1
    %v116 = vld [vmem:[#allocation0] sm:%s114]
    %s117 = sshllo.u32 0, 1
    %118 = vst [vmem:[%s1] sm:%s117] %v116
    %s119 = scalar_lea.vmem [#allocation0], 8
    %v120 = vld [vmem:[%s119] sm:%s114]
    %s121 = sshllo.u32 0, 1
    %s122 = scalar_lea.vmem %s1, 1
    %123 = vst [vmem:[%s122] sm:%s121] %v120
    %s124 = scalar_lea.vmem [#allocation0], 16
    %v125 = vld [vmem:[%s124] sm:%s114]
    %s126 = sshllo.u32 0, 1
    %s127 = smul.addr 1, 2
    %s128 = scalar_lea.vmem %s1, %s127
    %129 = vst [vmem:[%s128] sm:%s126] %v125
    %s130 = scalar_lea.vmem [#allocation0], 24
    %v131 = vld [vmem:[%s130] sm:%s114]
    %s132 = sshllo.u32 0, 1
    %s133 = smul.addr 1, 3
    %s134 = scalar_lea.vmem %s1, %s133
    %135 = vst [vmem:[%s134] sm:%s132] %v131

// kernel: tile.43
$region0: #{tile.43}
  #allocation0 [shape = 's32[1]{0}', space=sflag, size = 0x4, scoped, tag = 'scoped memory for tile.43']
  %s0 = inlined_call_operand.vmem [shape: f32[48], index: 0, kind: input, shape index: {}]
  %s1 = inlined_call_operand.vmem [shape: f32[6,48], index: 1, kind: output, shape index: {}]
  // Predicated region
  $region2: #{tile.43} parent=0 // pred_check
    _
  $region3: #{tile.43} parent=0 // pred_check_branch
    %3 = sbr.rel (0) target = $region5
  $region4: #{tile.43} parent=0 // pred_region
    _
  $region5: #{tile.43} parent=0 // pred_fallthru
    _
  %v4 = vld [vmem:[%s0] ss:$0 sm:$0xff]
  %5 = vst [vmem:[%s1] sm:$0xff] %v4

// kernel: tile.44
$region0: #{tile.44}
  %s0 = inlined_call_operand.vmem [shape: f32[6,48], index: 0, kind: input, shape index: {}]
  %s1 = inlined_call_operand.vmem [shape: f32[1,288], index: 1, kind: output, shape index: {}]
  $region1: #{tile.44} parent=0
    #allocation0 [shape = 'u8[12288]{0}', space=vmem, size = 0x3000, scoped, tag = 'scoped mem for output reshape']
    %v2 = vld [vmem:[%s0] sm:$0x1]
    %vm3 = vcmask 392192
    %4 = vst.msk [vmem:[#allocation0] sm:$0x1] %vm3, %v2
    %s5 = scalar_lea.vmem %s0, 5
    %v6 = vld [vmem:[%s5] sm:$0x1]
    %s7 = scalar_lea.vmem %s0, 5
    %v8 = vld [vmem:[%s7] sm:$0x1]
    %vm9 = vcmask 130048
    %v10 = vsel %vm9, %v8, %v6
    %11 = vrot.lane.b32.xlu0 %v10, 112
    %v12 = vpop.permute.xlu0 %11
    %vm13 = vcmask 261120
    %s14 = scalar_lea.vmem [#allocation0], 16
    %15 = vst.msk [vmem:[%s14] sm:$0x1] %vm13, %v12
    %vm16 = vcmask 1048448
    %s17 = scalar_lea.vmem [#allocation0], 8
    %18 = vst.msk [vmem:[%s17] sm:$0x1] %vm16, %v12
    %s19 = scalar_lea.vmem %s0, 2
    %v20 = vld [vmem:[%s19] sm:$0x1]
    %s21 = scalar_lea.vmem %s0, 2
    %v22 = vld [vmem:[%s21] sm:$0x1]
    %vm23 = vcmask 261120
    %v24 = vsel %vm23, %v22, %v20
    %25 = vrot.lane.b32.xlu0 %v24, 96
    %v26 = vpop.permute.xlu0 %25
    %vm27 = vcmask 130048
    %s28 = scalar_lea.vmem [#allocation0], 8
    %29 = vst.msk [vmem:[%s28] sm:$0x1] %vm27, %v26
    %vm30 = vcmask 1048320
    %31 = vst.msk [vmem:[#allocation0] sm:$0x1] %vm30, %v26
    %s32 = scalar_lea.vmem %s0, 4
    %v33 = vld [vmem:[%s32] sm:$0x1]
    %34 = vrot.lane.b32.xlu0 %v33, 64
    %v35 = vpop.permute.xlu0 %34
    %vm36 = vcmask 916992
    %s37 = scalar_lea.vmem [#allocation0], 8
    %38 = vst.msk [vmem:[%s37] sm:$0x1] %vm36, %v35
    %s39 = scalar_lea.vmem %s0, 1
    %v40 = vld [vmem:[%s39] sm:$0x1]
    %41 = vrot.lane.b32.xlu0 %v40, 48
    %v42 = vpop.permute.xlu0 %41
    %vm43 = vcmask 785792
    %44 = vst.msk [vmem:[#allocation0] sm:$0x1] %vm43, %v42
    %s45 = scalar_lea.vmem %s0, 3
    %v46 = vld [vmem:[%s45] sm:$0x1]
    %47 = vrot.lane.b32.xlu0 %v46, 16
    %v48 = vpop.permute.xlu0 %47
    %vm49 = vcmask 523392
    %s50 = scalar_lea.vmem [#allocation0], 8
    %51 = vst.msk [vmem:[%s50] sm:$0x1] %vm49, %v48
    %s53 = sshllo.u32 0, 1
    %v55 = vld [vmem:[#allocation0] sm:%s53]
    %s56 = sshllo.u32 0, 1
    %57 = vst [vmem:[%s1] sm:%s56] %v55
    %s58 = scalar_lea.vmem [#allocation0], 8
    %v59 = vld [vmem:[%s58] sm:%s53]
    %s60 = sshllo.u32 0, 1
    %s61 = scalar_lea.vmem %s1, 1
    %62 = vst [vmem:[%s61] sm:%s60] %v59
    %s63 = scalar_lea.vmem [#allocation0], 16
    %v64 = vld [vmem:[%s63] sm:%s53]
    %s65 = sshllo.u32 0, 1
    %s66 = smul.addr 1, 2
    %s67 = scalar_lea.vmem %s1, %s66
    %68 = vst [vmem:[%s67] sm:%s65] %v64

// kernel: tile.53
$region0: #{tile.53}
  #allocation0 [shape = 's32[1]{0}', space=sflag, size = 0x4, scoped, tag = 'scoped memory for tile.53']
  %s0 = inlined_call_operand.vmem [shape: f32[64], index: 0, kind: input, shape index: {}]
  %s1 = inlined_call_operand.vmem [shape: f32[4,64], index: 1, kind: output, shape index: {}]
  // Predicated region
  $region2: #{tile.53} parent=0 // pred_check
    _
  $region3: #{tile.53} parent=0 // pred_check_branch
    %3 = sbr.rel (0) target = $region5
  $region4: #{tile.53} parent=0 // pred_region
    _
  $region5: #{tile.53} parent=0 // pred_fallthru
    _
  %v4 = vld [vmem:[%s0] ss:$0 sm:$0xff]
  %5 = vst [vmem:[%s1] sm:$0xf] %v4

// kernel: tile.54
$region0: #{tile.54}
  %s0 = inlined_call_operand.vmem [shape: f32[4,64], index: 0, kind: input, shape index: {}]
  %s1 = inlined_call_operand.vmem [shape: f32[1,256], index: 1, kind: output, shape index: {}]
  $region1: #{tile.54} parent=0
    #allocation0 [shape = 'u8[8192]{0}', space=vmem, size = 0x2000, scoped, tag = 'scoped mem for output reshape']
    #allocation1 [shape = 'u8[4096]{0}', space=vmem, size = 0x1000, scoped, tag = 'scoped mem for input reshape']
    %s3 = sshllo.u32 0, 4
    %v4 = vld [vmem:[%s0] sm:%s3]
    %5 = vst [vmem:[#allocation1] sm:%s3] %v4
    %s6 = smov 3
    %v7 = vld [vmem:[#allocation1] ss:$2 sm:%s6]
    %vm8 = vcmask 523264
    %9 = vst.msk [vmem:[#allocation0] ss:$8 sm:$0x3] %vm8, %v7
    %s10 = scalar_lea.vmem [#allocation1], 1
    %s11 = smov 3
    %v12 = vld [vmem:[%s10] ss:$2 sm:%s11]
    %13 = vrot.lane.b32.xlu0 %v12, 64
    %v14 = vpop.permute.xlu0 %13
    %vm15 = vcmask 1048064
    %16 = vst.msk [vmem:[#allocation0] ss:$8 sm:$0x3] %vm15, %v14
    %s18 = sshllo.u32 0, 1
    %v20 = vld [vmem:[#allocation0] sm:%s18]
    %s21 = sshllo.u32 0, 1
    %22 = vst [vmem:[%s1] sm:%s21] %v20
    %s23 = scalar_lea.vmem [#allocation0], 8
    %v24 = vld [vmem:[%s23] sm:%s18]
    %s25 = sshllo.u32 0, 1
    %s26 = scalar_lea.vmem %s1, 1
    %27 = vst [vmem:[%s26] sm:%s25] %v24

// kernel: rnet_forward.1
$region0: #{rnet_forward.1}
  #allocation0 [shape = 'u32[]', space=smem, size = 0x4, offset = 0x4, fixed_abs, tag = 'smem constant byte address 0x4 - core index']
  #allocation1 [shape = 'u32[144,128]{1,0:T(1,128)}', space=vmem, size = 0x12000, scoped, tag = 'internal scratch']
  #allocation2 [shape = 'f32[1,1]{1,0:T(1,128)S(1)}', space=vmem, size = 0x200, scoped, tag = 'scoped memory for rnet_forward.1']
  %s0 = inlined_call_operand.vmem [shape: f32[32,48], index: 0, kind: input, shape index: {}]
  %s1 = inlined_call_operand.vmem [shape: bf16[48,392], index: 1, kind: input, shape index: {}]
  %s2 = inlined_call_operand.vmem [shape: bf16[48,392], index: 2, kind: input, shape index: {}]
  %s3 = inlined_call_operand.vmem [shape: bf16[48,392], index: 3, kind: input, shape index: {}]
  %s4 = inlined_call_operand.vmem [shape: f32[1,392], index: 4, kind: input, shape index: {}]
  %s5 = inlined_call_operand.vmem [shape: f32[1,392], index: 5, kind: input, shape index: {}]
  %s6 = inlined_call_operand.vmem [shape: bf16[168,288], index: 6, kind: input, shape index: {}]
  %s7 = inlined_call_operand.vmem [shape: f32[1,288], index: 7, kind: input, shape index: {}]
  %s8 = inlined_call_operand.vmem [shape: f32[1,288], index: 8, kind: input, shape index: {}]
  %s9 = inlined_call_operand.vmem [shape: bf16[192,256], index: 9, kind: input, shape index: {}]
  %s10 = inlined_call_operand.vmem [shape: f32[1,256], index: 10, kind: input, shape index: {}]
  %s11 = inlined_call_operand.vmem [shape: f32[1,256], index: 11, kind: input, shape index: {}]
  %s12 = inlined_call_operand.vmem [shape: bf16[256,128], index: 12, kind: input, shape index: {}]
  %s13 = inlined_call_operand.vmem [shape: f32[1,128], index: 13, kind: input, shape index: {}]
  %s14 = inlined_call_operand.<no memory space> [shape: f32[1,1], index: 14, kind: input, shape index: {}]
  %s15 = inlined_call_operand.vmem [shape: bf16[128,8], index: 15, kind: input, shape index: {}]
  %s16 = inlined_call_operand.vmem [shape: f32[1,8], index: 16, kind: input, shape index: {}]
  %s17 = inlined_call_operand.vmem [shape: f32[2,8], index: 17, kind: output, shape index: {}]
  %s18 = sld [smem:[#allocation0]]
  $region78: #{rnet_forward.1} parent=0
    _
  %s20 = ssub.s32 1, %s18
  %s21 = scalar_select 0, %s20, %s18
  %v22 = vstv %s14
  %23 = vst [vmem:[#allocation2] sm:$0x1] %v22
  // Predicated region
  $region2: #{rnet_forward.1} parent=0 // pred_check
    _
  $region3: #{rnet_forward.1} parent=0 // pred_check_branch
    %25 = sbr.rel (0) target = $region5
  $region4: #{rnet_forward.1} parent=0 // pred_region
    _
  $region5: #{rnet_forward.1} parent=0 // pred_fallthru
    _
  // Predicated region
  $region6: #{rnet_forward.1} parent=0 // pred_check
    _
  $region7: #{rnet_forward.1} parent=0 // pred_check_branch
    %27 = sbr.rel (0) target = $region9
  $region8: #{rnet_forward.1} parent=0 // pred_region
    _
  $region9: #{rnet_forward.1} parent=0 // pred_fallthru
    _
  // Predicated region
  $region10: #{rnet_forward.1} parent=0 // pred_check
    _
  $region11: #{rnet_forward.1} parent=0 // pred_check_branch
    %29 = sbr.rel (0) target = $region13
  $region12: #{rnet_forward.1} parent=0 // pred_region
    _
  $region13: #{rnet_forward.1} parent=0 // pred_fallthru
    _
  // Predicated region
  $region14: #{rnet_forward.1} parent=0 // pred_check
    _
  $region15: #{rnet_forward.1} parent=0 // pred_check_branch
    %31 = sbr.rel (0) target = $region17
  $region16: #{rnet_forward.1} parent=0 // pred_region
    _
  $region17: #{rnet_forward.1} parent=0 // pred_fallthru
    _
  // Predicated region
  $region18: #{rnet_forward.1} parent=0 // pred_check
    _
  $region19: #{rnet_forward.1} parent=0 // pred_check_branch
    %33 = sbr.rel (0) target = $region21
  $region20: #{rnet_forward.1} parent=0 // pred_region
    _
  $region21: #{rnet_forward.1} parent=0 // pred_fallthru
    _
  // Predicated region
  $region22: #{rnet_forward.1} parent=0 // pred_check
    _
  $region23: #{rnet_forward.1} parent=0 // pred_check_branch
    %35 = sbr.rel (0) target = $region25
  $region24: #{rnet_forward.1} parent=0 // pred_region
    _
  $region25: #{rnet_forward.1} parent=0 // pred_fallthru
    _
  // Predicated region
  $region26: #{rnet_forward.1} parent=0 // pred_check
    _
  $region27: #{rnet_forward.1} parent=0 // pred_check_branch
    %37 = sbr.rel (0) target = $region29
  $region28: #{rnet_forward.1} parent=0 // pred_region
    _
  $region29: #{rnet_forward.1} parent=0 // pred_fallthru
    _
  // Predicated region
  $region30: #{rnet_forward.1} parent=0 // pred_check
    _
  $region31: #{rnet_forward.1} parent=0 // pred_check_branch
    %39 = sbr.rel (0) target = $region33
  $region32: #{rnet_forward.1} parent=0 // pred_region
    _
  $region33: #{rnet_forward.1} parent=0 // pred_fallthru
    _
  // Predicated region
  $region34: #{rnet_forward.1} parent=0 // pred_check
    _
  $region35: #{rnet_forward.1} parent=0 // pred_check_branch
    %41 = sbr.rel (0) target = $region37
  $region36: #{rnet_forward.1} parent=0 // pred_region
    _
  $region37: #{rnet_forward.1} parent=0 // pred_fallthru
    _
  // Predicated region
  $region38: #{rnet_forward.1} parent=0 // pred_check
    _
  $region39: #{rnet_forward.1} parent=0 // pred_check_branch
    %43 = sbr.rel (0) target = $region41
  $region40: #{rnet_forward.1} parent=0 // pred_region
    _
  $region41: #{rnet_forward.1} parent=0 // pred_fallthru
    _
  // Predicated region
  $region42: #{rnet_forward.1} parent=0 // pred_check
    _
  $region43: #{rnet_forward.1} parent=0 // pred_check_branch
    %45 = sbr.rel (0) target = $region45
  $region44: #{rnet_forward.1} parent=0 // pred_region
    _
  $region45: #{rnet_forward.1} parent=0 // pred_fallthru
    _
  // Predicated region
  $region46: #{rnet_forward.1} parent=0 // pred_check
    _
  $region47: #{rnet_forward.1} parent=0 // pred_check_branch
    %47 = sbr.rel (0) target = $region49
  $region48: #{rnet_forward.1} parent=0 // pred_region
    _
  $region49: #{rnet_forward.1} parent=0 // pred_fallthru
    _
  // Predicated region
  $region50: #{rnet_forward.1} parent=0 // pred_check
    _
  $region51: #{rnet_forward.1} parent=0 // pred_check_branch
    %49 = sbr.rel (0) target = $region53
  $region52: #{rnet_forward.1} parent=0 // pred_region
    _
  $region53: #{rnet_forward.1} parent=0 // pred_fallthru
    _
  // Predicated region
  $region54: #{rnet_forward.1} parent=0 // pred_check
    _
  $region55: #{rnet_forward.1} parent=0 // pred_check_branch
    %51 = sbr.rel (0) target = $region57
  $region56: #{rnet_forward.1} parent=0 // pred_region
    _
  $region57: #{rnet_forward.1} parent=0 // pred_fallthru
    _
  // Predicated region
  $region58: #{rnet_forward.1} parent=0 // pred_check
    _
  $region59: #{rnet_forward.1} parent=0 // pred_check_branch
    %53 = sbr.rel (0) target = $region61
  $region60: #{rnet_forward.1} parent=0 // pred_region
    _
  $region61: #{rnet_forward.1} parent=0 // pred_fallthru
    _
  // Predicated region
  $region62: #{rnet_forward.1} parent=0 // pred_check
    _
  $region63: #{rnet_forward.1} parent=0 // pred_check_branch
    %55 = sbr.rel (0) target = $region65
  $region64: #{rnet_forward.1} parent=0 // pred_region
    _
  $region65: #{rnet_forward.1} parent=0 // pred_fallthru
    _
  // Predicated region
  $region66: #{rnet_forward.1} parent=0 // pred_check
    _
  $region67: #{rnet_forward.1} parent=0 // pred_check_branch
    %57 = sbr.rel (0) target = $region69
  $region68: #{rnet_forward.1} parent=0 // pred_region
    _
  $region69: #{rnet_forward.1} parent=0 // pred_fallthru
    _
  %v59 = vld [vmem:[%s0] sm:$0xff]
  %v60 = vld [vmem:[%s0 + $0x8] sm:$0xff]
  %v61 = vld [vmem:[%s0 + $0x10] sm:$0xff]
  %v62 = vld [vmem:[%s0 + $0x18] sm:$0xff]
  %v63 = vpack.c.bf16 %v60, %v59
  %v64 = vpack.c.bf16 %v62, %v61
  %v65 = vld [vmem:[%s1] sm:$0xff]
  %v66 = vld [vmem:[%s1 + $0x8] sm:$0xff]
  %v67 = vld [vmem:[%s1 + $0x10] sm:$0xff]
  %v68 = vld [vmem:[%s1 + $0x18] sm:$0xff]
  %v69 = vld [vmem:[%s1 + $0x20] sm:$0xff]
  %v70 = vld [vmem:[%s1 + $0x28] sm:$0xff]
  %v71 = vld [vmem:[%s1 + $0x30] sm:$0xff]
  %v72 = vld [vmem:[%s1 + $0x38] sm:$0xff]
  %v73 = vld [vmem:[%s1 + $0x40] sm:$0xff]
  %v74 = vld [vmem:[%s1 + $0x48] sm:$0xff]
  %v75 = vld [vmem:[%s1 + $0x50] sm:$0xff]
  %v76 = vld [vmem:[%s1 + $0x58] sm:$0xff]
  %v89 = vunpack.c.l.b16 %v65
  %v90 = vunpack.c.h.b16 %v65
  %v91 = vunpack.c.l.b16 %v66
  %v92 = vunpack.c.h.b16 %v66
  %v93 = vunpack.c.l.b16 %v67
  %v94 = vunpack.c.h.b16 %v67
  %v95 = vunpack.c.l.b16 %v68
  %v96 = vunpack.c.h.b16 %v68
  %v97 = vunpack.c.l.b16 %v69
  %v98 = vunpack.c.h.b16 %v69
  %v99 = vunpack.c.l.b16 %v70
  %v100 = vunpack.c.h.b16 %v70
  %v101 = vunpack.c.l.b16 %v71
  %v102 = vunpack.c.h.b16 %v71
  %v103 = vunpack.c.l.b16 %v72
  %v104 = vunpack.c.h.b16 %v72
  %v105 = vunpack.c.l.b16 %v73
  %v106 = vunpack.c.h.b16 %v73
  %v107 = vunpack.c.l.b16 %v74
  %v108 = vunpack.c.h.b16 %v74
  %v109 = vunpack.c.l.b16 %v75
  %v110 = vunpack.c.h.b16 %v75
  %v111 = vunpack.c.l.b16 %v76
  %v112 = vunpack.c.h.b16 %v76
  %v113 = vpack.c.b16 %v93, %v89
  %v114 = vpack.c.b16 %v94, %v90
  %v115 = vpack.c.b16 %v95, %v91
  %v116 = vpack.c.b16 %v96, %v92
  %v117 = vpack.c.b16 %v101, %v97
  %v118 = vpack.c.b16 %v102, %v98
  %v119 = vpack.c.b16 %v103, %v99
  %v120 = vpack.c.b16 %v104, %v100
  %v121 = vpack.c.b16 %v109, %v105
  %v122 = vpack.c.b16 %v110, %v106
  %v123 = vpack.c.b16 %v111, %v107
  %v124 = vpack.c.b16 %v112, %v108
  %vm137 = vcmask 392192
  %v139 = vsel %vm137, %v63, 0
  %v142 = vsel %vm137, %v64, 0
  %144 = vmatprep.subr.bf16.mxu0 %v114
  %145 = vmatpush1.bf16.msra.mxu0 %v113
  %146 = vmatprep.subr.bf16.mxu0 %v118
  %147 = vmatpush1.bf16.msra.mxu0 %v117
  %148 = vmatprep.subr.bf16.mxu0 %v122
  %149 = vmatpush1.bf16.msra.mxu0 %v121
  %150 = vmatprep.subr.bf16.mxu0 0
  %151 = vmatpush1.bf16.msra.mxu0 0
  %152 = vmatprep.subr.bf16.mxu0 0
  %153 = vmatpush1.bf16.msra.mxu0 0
  %154 = vmatprep.subr.bf16.mxu0 0
  %155 = vmatpush1.bf16.msra.mxu0 0
  %156 = vmatprep.subr.bf16.mxu0 0
  %157 = vmatpush1.bf16.msra.mxu0 0
  %158 = vmatprep.subr.bf16.mxu0 0
  %159 = vmatpush1.bf16.msra.mxu0 0
  %160 = vmatprep.subr.bf16.mxu0 0
  %161 = vmatpush1.bf16.msra.mxu0 0
  %162 = vmatprep.subr.bf16.mxu0 0
  %163 = vmatpush1.bf16.msra.mxu0 0
  %164 = vmatprep.subr.bf16.mxu0 0
  %165 = vmatpush1.bf16.msra.mxu0 0
  %166 = vmatprep.subr.bf16.mxu0 0
  %167 = vmatpush1.bf16.msra.mxu0 0
  %168 = vmatprep.subr.bf16.mxu0 0
  %169 = vmatpush1.bf16.msra.mxu0 0
  %170 = vmatprep.subr.bf16.mxu0 0
  %171 = vmatpush1.bf16.msra.mxu0 0
  %172 = vmatprep.subr.bf16.mxu0 0
  %173 = vmatpush1.bf16.msra.mxu0 0
  %174 = vmatprep.subr.bf16.mxu0 0
  %175 = vmatpush1.bf16.msra.mxu0 0
  %176 = vmatprep.mubr.bf16.mxu0 0
  %177 = vmatmul.mubr.bf16.gmra.mrb[0].mxu0 %v139
  %v178 = vpop.f32.mrb[0].mxu0
  %v179 = vadd.f32 0.0, %v178
  %v180 = vpop.f32.mrb[0].mxu0
  %v181 = vadd.f32 0.0, %v180
  %v182 = vpop.f32.mrb[0].mxu0
  %v183 = vadd.f32 0.0, %v182
  %v184 = vpop.f32.mrb[0].mxu0
  %v185 = vadd.f32 0.0, %v184
  %186 = vmatprep.mubr.bf16.mxu0 0
  %187 = vmatmul.mubr.bf16.gmra.mrb[0].mxu0 %v142
  %v188 = vpop.f32.mrb[0].mxu0
  %v189 = vadd.f32 0.0, %v188
  %v190 = vpop.f32.mrb[0].mxu0
  %v191 = vadd.f32 0.0, %v190
  %v192 = vpop.f32.mrb[0].mxu0
  %v193 = vadd.f32 0.0, %v192
  %v194 = vpop.f32.mrb[0].mxu0
  %v195 = vadd.f32 0.0, %v194
  %196 = vdwg.mxu0
  %197 = vmatprep.subr.bf16.mxu0 %v116
  %198 = vmatpush1.bf16.msra.mxu0 %v115
  %199 = vmatprep.subr.bf16.mxu0 %v120
  %200 = vmatpush1.bf16.msra.mxu0 %v119
  %201 = vmatprep.subr.bf16.mxu0 %v124
  %202 = vmatpush1.bf16.msra.mxu0 %v123
  %203 = vmatprep.subr.bf16.mxu0 0
  %204 = vmatpush1.bf16.msra.mxu0 0
  %205 = vmatprep.subr.bf16.mxu0 0
  %206 = vmatpush1.bf16.msra.mxu0 0
  %207 = vmatprep.subr.bf16.mxu0 0
  %208 = vmatpush1.bf16.msra.mxu0 0
  %209 = vmatprep.subr.bf16.mxu0 0
  %210 = vmatpush1.bf16.msra.mxu0 0
  %211 = vmatprep.subr.bf16.mxu0 0
  %212 = vmatpush1.bf16.msra.mxu0 0
  %213 = vmatprep.subr.bf16.mxu0 0
  %214 = vmatpush1.bf16.msra.mxu0 0
  %215 = vmatprep.subr.bf16.mxu0 0
  %216 = vmatpush1.bf16.msra.mxu0 0
  %217 = vmatprep.subr.bf16.mxu0 0
  %218 = vmatpush1.bf16.msra.mxu0 0
  %219 = vmatprep.subr.bf16.mxu0 0
  %220 = vmatpush1.bf16.msra.mxu0 0
  %221 = vmatprep.subr.bf16.mxu0 0
  %222 = vmatpush1.bf16.msra.mxu0 0
  %223 = vmatprep.subr.bf16.mxu0 0
  %224 = vmatpush1.bf16.msra.mxu0 0
  %225 = vmatprep.subr.bf16.mxu0 0
  %226 = vmatpush1.bf16.msra.mxu0 0
  %227 = vmatprep.subr.bf16.mxu0 0
  %228 = vmatpush1.bf16.msra.mxu0 0
  %229 = vmatprep.mubr.bf16.mxu0 0
  %230 = vmatmul.mubr.bf16.gmra.mrb[0].mxu0 %v139
  %v231 = vpop.f32.mrb[0].mxu0
  %v232 = vadd.f32 0.0, %v231
  %v233 = vpop.f32.mrb[0].mxu0
  %v234 = vpop.f32.mrb[0].mxu0
  %v235 = vadd.f32 0.0, %v234
  %v236 = vpop.f32.mrb[0].mxu0
  %237 = vmatprep.mubr.bf16.mxu0 0
  %238 = vmatmul.mubr.bf16.gmra.mrb[0].mxu0 %v142
  %v239 = vpop.f32.mrb[0].mxu0
  %v240 = vadd.f32 0.0, %v239
  %v241 = vpop.f32.mrb[0].mxu0
  %v242 = vpop.f32.mrb[0].mxu0
  %v243 = vadd.f32 0.0, %v242
  %v244 = vpop.f32.mrb[0].mxu0
  %245 = vdwg.mxu0
  %v246 = vld [vmem:[%s2] sm:$0xff]
  %v247 = vld [vmem:[%s2 + $0x8] sm:$0xff]
  %v248 = vld [vmem:[%s2 + $0x10] sm:$0xff]
  %v249 = vld [vmem:[%s2 + $0x18] sm:$0xff]
  %v250 = vld [vmem:[%s2 + $0x20] sm:$0xff]
  %v251 = vld [vmem:[%s2 + $0x28] sm:$0xff]
  %v252 = vld [vmem:[%s2 + $0x30] sm:$0xff]
  %v253 = vld [vmem:[%s2 + $0x38] sm:$0xff]
  %v254 = vld [vmem:[%s2 + $0x40] sm:$0xff]
  %v255 = vld [vmem:[%s2 + $0x48] sm:$0xff]
  %v256 = vld [vmem:[%s2 + $0x50] sm:$0xff]
  %v257 = vld [vmem:[%s2 + $0x58] sm:$0xff]
  %v270 = vunpack.c.l.b16 %v246
  %v271 = vunpack.c.h.b16 %v246
  %v272 = vunpack.c.l.b16 %v247
  %v273 = vunpack.c.h.b16 %v247
  %v274 = vunpack.c.l.b16 %v248
  %v275 = vunpack.c.h.b16 %v248
  %v276 = vunpack.c.l.b16 %v249
  %v277 = vunpack.c.h.b16 %v249
  %v278 = vunpack.c.l.b16 %v250
  %v279 = vunpack.c.h.b16 %v250
  %v280 = vunpack.c.l.b16 %v251
  %v281 = vunpack.c.h.b16 %v251
  %v282 = vunpack.c.l.b16 %v252
  %v283 = vunpack.c.h.b16 %v252
  %v284 = vunpack.c.l.b16 %v253
  %v285 = vunpack.c.h.b16 %v253
  %v286 = vunpack.c.l.b16 %v254
  %v287 = vunpack.c.h.b16 %v254
  %v288 = vunpack.c.l.b16 %v255
  %v289 = vunpack.c.h.b16 %v255
  %v290 = vunpack.c.l.b16 %v256
  %v291 = vunpack.c.h.b16 %v256
  %v292 = vunpack.c.l.b16 %v257
  %v293 = vunpack.c.h.b16 %v257
  %v294 = vpack.c.b16 %v274, %v270
  %v295 = vpack.c.b16 %v275, %v271
  %v296 = vpack.c.b16 %v276, %v272
  %v297 = vpack.c.b16 %v277, %v273
  %v298 = vpack.c.b16 %v282, %v278
  %v299 = vpack.c.b16 %v283, %v279
  %v300 = vpack.c.b16 %v284, %v280
  %v301 = vpack.c.b16 %v285, %v281
  %v302 = vpack.c.b16 %v290, %v286
  %v303 = vpack.c.b16 %v291, %v287
  %v304 = vpack.c.b16 %v292, %v288
  %v305 = vpack.c.b16 %v293, %v289
  %318 = vmatprep.subr.bf16.mxu0 %v295
  %319 = vmatpush1.bf16.msra.mxu0 %v294
  %320 = vmatprep.subr.bf16.mxu0 %v299
  %321 = vmatpush1.bf16.msra.mxu0 %v298
  %322 = vmatprep.subr.bf16.mxu0 %v303
  %323 = vmatpush1.bf16.msra.mxu0 %v302
  %324 = vmatprep.subr.bf16.mxu0 0
  %325 = vmatpush1.bf16.msra.mxu0 0
  %326 = vmatprep.subr.bf16.mxu0 0
  %327 = vmatpush1.bf16.msra.mxu0 0
  %328 = vmatprep.subr.bf16.mxu0 0
  %329 = vmatpush1.bf16.msra.mxu0 0
  %330 = vmatprep.subr.bf16.mxu0 0
  %331 = vmatpush1.bf16.msra.mxu0 0
  %332 = vmatprep.subr.bf16.mxu0 0
  %333 = vmatpush1.bf16.msra.mxu0 0
  %334 = vmatprep.subr.bf16.mxu0 0
  %335 = vmatpush1.bf16.msra.mxu0 0
  %336 = vmatprep.subr.bf16.mxu0 0
  %337 = vmatpush1.bf16.msra.mxu0 0
  %338 = vmatprep.subr.bf16.mxu0 0
  %339 = vmatpush1.bf16.msra.mxu0 0
  %340 = vmatprep.subr.bf16.mxu0 0
  %341 = vmatpush1.bf16.msra.mxu0 0
  %342 = vmatprep.subr.bf16.mxu0 0
  %343 = vmatpush1.bf16.msra.mxu0 0
  %344 = vmatprep.subr.bf16.mxu0 0
  %345 = vmatpush1.bf16.msra.mxu0 0
  %346 = vmatprep.subr.bf16.mxu0 0
  %347 = vmatpush1.bf16.msra.mxu0 0
  %348 = vmatprep.subr.bf16.mxu0 0
  %349 = vmatpush1.bf16.msra.mxu0 0
  %350 = vmatprep.mubr.bf16.mxu0 0
  %351 = vmatmul.mubr.bf16.gmra.mrb[0].mxu0 %v139
  %v352 = vpop.f32.mrb[0].mxu0
  %v353 = vadd.f32 0.0, %v352
  %v354 = vpop.f32.mrb[0].mxu0
  %v355 = vadd.f32 0.0, %v354
  %v356 = vpop.f32.mrb[0].mxu0
  %v357 = vadd.f32 0.0, %v356
  %v358 = vpop.f32.mrb[0].mxu0
  %v359 = vadd.f32 0.0, %v358
  %360 = vmatprep.mubr.bf16.mxu0 0
  %361 = vmatmul.mubr.bf16.gmra.mrb[0].mxu0 %v142
  %v362 = vpop.f32.mrb[0].mxu0
  %v363 = vadd.f32 0.0, %v362
  %v364 = vpop.f32.mrb[0].mxu0
  %v365 = vadd.f32 0.0, %v364
  %v366 = vpop.f32.mrb[0].mxu0
  %v367 = vadd.f32 0.0, %v366
  %v368 = vpop.f32.mrb[0].mxu0
  %v369 = vadd.f32 0.0, %v368
  %370 = vdwg.mxu0
  %371 = vmatprep.subr.bf16.mxu0 %v297
  %372 = vmatpush1.bf16.msra.mxu0 %v296
  %373 = vmatprep.subr.bf16.mxu0 %v301
  %374 = vmatpush1.bf16.msra.mxu0 %v300
  %375 = vmatprep.subr.bf16.mxu0 %v305
  %376 = vmatpush1.bf16.msra.mxu0 %v304
  %377 = vmatprep.subr.bf16.mxu0 0
  %378 = vmatpush1.bf16.msra.mxu0 0
  %379 = vmatprep.subr.bf16.mxu0 0
  %380 = vmatpush1.bf16.msra.mxu0 0
  %381 = vmatprep.subr.bf16.mxu0 0
  %382 = vmatpush1.bf16.msra.mxu0 0
  %383 = vmatprep.subr.bf16.mxu0 0
  %384 = vmatpush1.bf16.msra.mxu0 0
  %385 = vmatprep.subr.bf16.mxu0 0
  %386 = vmatpush1.bf16.msra.mxu0 0
  %387 = vmatprep.subr.bf16.mxu0 0
  %388 = vmatpush1.bf16.msra.mxu0 0
  %389 = vmatprep.subr.bf16.mxu0 0
  %390 = vmatpush1.bf16.msra.mxu0 0
  %391 = vmatprep.subr.bf16.mxu0 0
  %392 = vmatpush1.bf16.msra.mxu0 0
  %393 = vmatprep.subr.bf16.mxu0 0
  %394 = vmatpush1.bf16.msra.mxu0 0
  %395 = vmatprep.subr.bf16.mxu0 0
  %396 = vmatpush1.bf16.msra.mxu0 0
  %397 = vmatprep.subr.bf16.mxu0 0
  %398 = vmatpush1.bf16.msra.mxu0 0
  %399 = vmatprep.subr.bf16.mxu0 0
  %400 = vmatpush1.bf16.msra.mxu0 0
  %401 = vmatprep.subr.bf16.mxu0 0
  %402 = vmatpush1.bf16.msra.mxu0 0
  %403 = vmatprep.mubr.bf16.mxu0 0
  %404 = vmatmul.mubr.bf16.gmra.mrb[0].mxu0 %v139
  %v405 = vpop.f32.mrb[0].mxu0
  %v406 = vadd.f32 0.0, %v405
  %v407 = vpop.f32.mrb[0].mxu0
  %v408 = vpop.f32.mrb[0].mxu0
  %v409 = vadd.f32 0.0, %v408
  %v410 = vpop.f32.mrb[0].mxu0
  %411 = vmatprep.mubr.bf16.mxu0 0
  %412 = vmatmul.mubr.bf16.gmra.mrb[0].mxu0 %v142
  %v413 = vpop.f32.mrb[0].mxu0
  %v414 = vadd.f32 0.0, %v413
  %v415 = vpop.f32.mrb[0].mxu0
  %v416 = vpop.f32.mrb[0].mxu0
  %v417 = vadd.f32 0.0, %v416
  %v418 = vpop.f32.mrb[0].mxu0
  %419 = vdwg.mxu0
  %v420 = vld [vmem:[%s3] sm:$0xff]
  %v421 = vld [vmem:[%s3 + $0x8] sm:$0xff]
  %v422 = vld [vmem:[%s3 + $0x10] sm:$0xff]
  %v423 = vld [vmem:[%s3 + $0x18] sm:$0xff]
  %v424 = vld [vmem:[%s3 + $0x20] sm:$0xff]
  %v425 = vld [vmem:[%s3 + $0x28] sm:$0xff]
  %v426 = vld [vmem:[%s3 + $0x30] sm:$0xff]
  %v427 = vld [vmem:[%s3 + $0x38] sm:$0xff]
  %v428 = vld [vmem:[%s3 + $0x40] sm:$0xff]
  %v429 = vld [vmem:[%s3 + $0x48] sm:$0xff]
  %v430 = vld [vmem:[%s3 + $0x50] sm:$0xff]
  %v431 = vld [vmem:[%s3 + $0x58] sm:$0xff]
  %v444 = vunpack.c.l.b16 %v420
  %v445 = vunpack.c.h.b16 %v420
  %v446 = vunpack.c.l.b16 %v421
  %v447 = vunpack.c.h.b16 %v421
  %v448 = vunpack.c.l.b16 %v422
  %v449 = vunpack.c.h.b16 %v422
  %v450 = vunpack.c.l.b16 %v423
  %v451 = vunpack.c.h.b16 %v423
  %v452 = vunpack.c.l.b16 %v424
  %v453 = vunpack.c.h.b16 %v424
  %v454 = vunpack.c.l.b16 %v425
  %v455 = vunpack.c.h.b16 %v425
  %v456 = vunpack.c.l.b16 %v426
  %v457 = vunpack.c.h.b16 %v426
  %v458 = vunpack.c.l.b16 %v427
  %v459 = vunpack.c.h.b16 %v427
  %v460 = vunpack.c.l.b16 %v428
  %v461 = vunpack.c.h.b16 %v428
  %v462 = vunpack.c.l.b16 %v429
  %v463 = vunpack.c.h.b16 %v429
  %v464 = vunpack.c.l.b16 %v430
  %v465 = vunpack.c.h.b16 %v430
  %v466 = vunpack.c.l.b16 %v431
  %v467 = vunpack.c.h.b16 %v431
  %v468 = vpack.c.b16 %v448, %v444
  %v469 = vpack.c.b16 %v449, %v445
  %v470 = vpack.c.b16 %v450, %v446
  %v471 = vpack.c.b16 %v451, %v447
  %v472 = vpack.c.b16 %v456, %v452
  %v473 = vpack.c.b16 %v457, %v453
  %v474 = vpack.c.b16 %v458, %v454
  %v475 = vpack.c.b16 %v459, %v455
  %v476 = vpack.c.b16 %v464, %v460
  %v477 = vpack.c.b16 %v465, %v461
  %v478 = vpack.c.b16 %v466, %v462
  %v479 = vpack.c.b16 %v467, %v463
  %492 = vmatprep.subr.bf16.mxu0 %v469
  %493 = vmatpush1.bf16.msra.mxu0 %v468
  %494 = vmatprep.subr.bf16.mxu0 %v473
  %495 = vmatpush1.bf16.msra.mxu0 %v472
  %496 = vmatprep.subr.bf16.mxu0 %v477
  %497 = vmatpush1.bf16.msra.mxu0 %v476
  %498 = vmatprep.subr.bf16.mxu0 0
  %499 = vmatpush1.bf16.msra.mxu0 0
  %500 = vmatprep.subr.bf16.mxu0 0
  %501 = vmatpush1.bf16.msra.mxu0 0
  %502 = vmatprep.subr.bf16.mxu0 0
  %503 = vmatpush1.bf16.msra.mxu0 0
  %504 = vmatprep.subr.bf16.mxu0 0
  %505 = vmatpush1.bf16.msra.mxu0 0
  %506 = vmatprep.subr.bf16.mxu0 0
  %507 = vmatpush1.bf16.msra.mxu0 0
  %508 = vmatprep.subr.bf16.mxu0 0
  %509 = vmatpush1.bf16.msra.mxu0 0
  %510 = vmatprep.subr.bf16.mxu0 0
  %511 = vmatpush1.bf16.msra.mxu0 0
  %512 = vmatprep.subr.bf16.mxu0 0
  %513 = vmatpush1.bf16.msra.mxu0 0
  %514 = vmatprep.subr.bf16.mxu0 0
  %515 = vmatpush1.bf16.msra.mxu0 0
  %516 = vmatprep.subr.bf16.mxu0 0
  %517 = vmatpush1.bf16.msra.mxu0 0
  %518 = vmatprep.subr.bf16.mxu0 0
  %519 = vmatpush1.bf16.msra.mxu0 0
  %520 = vmatprep.subr.bf16.mxu0 0
  %521 = vmatpush1.bf16.msra.mxu0 0
  %522 = vmatprep.subr.bf16.mxu0 0
  %523 = vmatpush1.bf16.msra.mxu0 0
  %524 = vmatprep.mubr.bf16.mxu0 0
  %525 = vmatmul.mubr.bf16.gmra.mrb[0].mxu0 %v139
  %v526 = vpop.f32.mrb[0].mxu0
  %v527 = vadd.f32 0.0, %v526
  %v528 = vpop.f32.mrb[0].mxu0
  %v529 = vadd.f32 0.0, %v528
  %v530 = vpop.f32.mrb[0].mxu0
  %v531 = vadd.f32 0.0, %v530
  %v532 = vpop.f32.mrb[0].mxu0
  %v533 = vadd.f32 0.0, %v532
  %534 = vmatprep.mubr.bf16.mxu0 0
  %535 = vmatmul.mubr.bf16.gmra.mrb[0].mxu0 %v142
  %v536 = vpop.f32.mrb[0].mxu0
  %v537 = vadd.f32 0.0, %v536
  %v538 = vpop.f32.mrb[0].mxu0
  %v539 = vadd.f32 0.0, %v538
  %v540 = vpop.f32.mrb[0].mxu0
  %v541 = vadd.f32 0.0, %v540
  %v542 = vpop.f32.mrb[0].mxu0
  %v543 = vadd.f32 0.0, %v542
  %544 = vdwg.mxu0
  %545 = vmatprep.subr.bf16.mxu0 %v471
  %546 = vmatpush1.bf16.msra.mxu0 %v470
  %547 = vmatprep.subr.bf16.mxu0 %v475
  %548 = vmatpush1.bf16.msra.mxu0 %v474
  %549 = vmatprep.subr.bf16.mxu0 %v479
  %550 = vmatpush1.bf16.msra.mxu0 %v478
  %551 = vmatprep.subr.bf16.mxu0 0
  %552 = vmatpush1.bf16.msra.mxu0 0
  %553 = vmatprep.subr.bf16.mxu0 0
  %554 = vmatpush1.bf16.msra.mxu0 0
  %555 = vmatprep.subr.bf16.mxu0 0
  %556 = vmatpush1.bf16.msra.mxu0 0
  %557 = vmatprep.subr.bf16.mxu0 0
  %558 = vmatpush1.bf16.msra.mxu0 0
  %559 = vmatprep.subr.bf16.mxu0 0
  %560 = vmatpush1.bf16.msra.mxu0 0
  %561 = vmatprep.subr.bf16.mxu0 0
  %562 = vmatpush1.bf16.msra.mxu0 0
  %563 = vmatprep.subr.bf16.mxu0 0
  %564 = vmatpush1.bf16.msra.mxu0 0
  %565 = vmatprep.subr.bf16.mxu0 0
  %566 = vmatpush1.bf16.msra.mxu0 0
  %567 = vmatprep.subr.bf16.mxu0 0
  %568 = vmatpush1.bf16.msra.mxu0 0
  %569 = vmatprep.subr.bf16.mxu0 0
  %570 = vmatpush1.bf16.msra.mxu0 0
  %571 = vmatprep.subr.bf16.mxu0 0
  %572 = vmatpush1.bf16.msra.mxu0 0
  %573 = vmatprep.subr.bf16.mxu0 0
  %574 = vmatpush1.bf16.msra.mxu0 0
  %575 = vmatprep.subr.bf16.mxu0 0
  %576 = vmatpush1.bf16.msra.mxu0 0
  %577 = vmatprep.mubr.bf16.mxu0 0
  %578 = vmatmul.mubr.bf16.gmra.mrb[0].mxu0 %v139
  %v579 = vpop.f32.mrb[0].mxu0
  %v580 = vadd.f32 0.0, %v579
  %v581 = vpop.f32.mrb[0].mxu0
  %v582 = vpop.f32.mrb[0].mxu0
  %v583 = vadd.f32 0.0, %v582
  %v584 = vpop.f32.mrb[0].mxu0
  %585 = vmatprep.mubr.bf16.mxu0 0
  %586 = vmatmul.mubr.bf16.gmra.mrb[0].mxu0 %v142
  %v587 = vpop.f32.mrb[0].mxu0
  %v588 = vadd.f32 0.0, %v587
  %v589 = vpop.f32.mrb[0].mxu0
  %v590 = vpop.f32.mrb[0].mxu0
  %v591 = vadd.f32 0.0, %v590
  %v592 = vpop.f32.mrb[0].mxu0
  %593 = vdwg.mxu0
  %vm606 = vcmask 1046528
  %v607 = vrot.slane %v353, 1
  %v608 = vrot.slane %v357, 1
  %v609 = vsel %vm606, %v607, %v608
  %v610 = vrot.slane %v355, 1
  %v611 = vrot.slane %v359, 1
  %v612 = vsel %vm606, %v610, %v611
  %v613 = vrot.slane %v406, 1
  %v614 = vrot.slane %v409, 1
  %v615 = vsel %vm606, %v613, %v614
  %v616 = vrot.slane %v363, 1
  %v617 = vrot.slane %v367, 1
  %v618 = vsel %vm606, %v616, %v617
  %v619 = vrot.slane %v365, 1
  %v620 = vrot.slane %v369, 1
  %v621 = vsel %vm606, %v619, %v620
  %v622 = vrot.slane %v414, 1
  %v623 = vrot.slane %v417, 1
  %v624 = vsel %vm606, %v622, %v623
  %v637 = vadd.f32 %v179, %v609
  %v638 = vadd.f32 %v181, %v612
  %v639 = vadd.f32 %v232, %v615
  %v640 = vadd.f32 %v183, %v608
  %v641 = vadd.f32 %v185, %v611
  %v642 = vadd.f32 %v235, %v614
  %v643 = vadd.f32 %v189, %v618
  %v644 = vadd.f32 %v191, %v621
  %v645 = vadd.f32 %v240, %v624
  %v646 = vadd.f32 %v193, %v617
  %v647 = vadd.f32 %v195, %v620
  %v648 = vadd.f32 %v243, %v623
  %vm661 = vcmask 1045504
  %v662 = vrot.slane %v527, 2
  %v663 = vrot.slane %v531, 2
  %v664 = vsel %vm661, %v662, %v663
  %v665 = vrot.slane %v529, 2
  %v666 = vrot.slane %v533, 2
  %v667 = vsel %vm661, %v665, %v666
  %v668 = vrot.slane %v580, 2
  %v669 = vrot.slane %v583, 2
  %v670 = vsel %vm661, %v668, %v669
  %v671 = vrot.slane %v537, 2
  %v672 = vrot.slane %v541, 2
  %v673 = vsel %vm661, %v671, %v672
  %v674 = vrot.slane %v539, 2
  %v675 = vrot.slane %v543, 2
  %v676 = vsel %vm661, %v674, %v675
  %v677 = vrot.slane %v588, 2
  %v678 = vrot.slane %v591, 2
  %v679 = vsel %vm661, %v677, %v678
  %v692 = vadd.f32 %v637, %v664
  %v693 = vadd.f32 %v638, %v667
  %v694 = vadd.f32 %v639, %v670
  %v695 = vadd.f32 %v640, %v663
  %v696 = vadd.f32 %v641, %v666
  %v697 = vadd.f32 %v642, %v669
  %v698 = vadd.f32 %v643, %v673
  %v699 = vadd.f32 %v644, %v676
  %v700 = vadd.f32 %v645, %v679
  %v701 = vadd.f32 %v646, %v672
  %v702 = vadd.f32 %v647, %v675
  %v703 = vadd.f32 %v648, %v678
  %v704 = vld [vmem:[%s4] sm:$0xf]
  %v706 = vlaneseq
  %v707 = vshrl.u32 %v706, 7
  %v708 = vsub.s32 0, %v707
  %v709 = vrot.slane %v704, %v708
  %v710 = vlaneseq
  %v711 = vshrl.u32 %v710, 7
  %v712 = vsub.s32 1, %v711
  %v713 = vrot.slane %v704, %v712
  %v714 = vlaneseq
  %v715 = vshrl.u32 %v714, 7
  %v716 = vsub.s32 2, %v715
  %v717 = vrot.slane %v704, %v716
  %v721 = vadd.f32 %v692, %v709
  %v722 = vadd.f32 %v693, %v713
  %v723 = vadd.f32 %v694, %v717
  %v724 = vadd.f32 %v695, %v709
  %v725 = vadd.f32 %v696, %v713
  %v726 = vadd.f32 %v697, %v717
  %v727 = vadd.f32 %v698, %v709
  %v728 = vadd.f32 %v699, %v713
  %v729 = vadd.f32 %v700, %v717
  %v730 = vadd.f32 %v701, %v709
  %v731 = vadd.f32 %v702, %v713
  %v732 = vadd.f32 %v703, %v717
  %vm733 = vcmp.gt.f32.partialorder %v721, 0.0
  %vm734 = vcmp.gt.f32.partialorder %v722, 0.0
  %vm735 = vcmp.gt.f32.partialorder %v723, 0.0
  %vm736 = vcmp.gt.f32.partialorder %v724, 0.0
  %vm737 = vcmp.gt.f32.partialorder %v725, 0.0
  %vm738 = vcmp.gt.f32.partialorder %v726, 0.0
  %vm739 = vcmp.gt.f32.partialorder %v727, 0.0
  %vm740 = vcmp.gt.f32.partialorder %v728, 0.0
  %vm741 = vcmp.gt.f32.partialorder %v729, 0.0
  %vm742 = vcmp.gt.f32.partialorder %v730, 0.0
  %vm743 = vcmp.gt.f32.partialorder %v731, 0.0
  %vm744 = vcmp.gt.f32.partialorder %v732, 0.0
  %v745 = vld [vmem:[%s5] sm:$0xf]
  %v747 = vlaneseq
  %v748 = vshrl.u32 %v747, 7
  %v749 = vsub.s32 0, %v748
  %v750 = vrot.slane %v745, %v749
  %v751 = vlaneseq
  %v752 = vshrl.u32 %v751, 7
  %v753 = vsub.s32 1, %v752
  %v754 = vrot.slane %v745, %v753
  %v755 = vlaneseq
  %v756 = vshrl.u32 %v755, 7
  %v757 = vsub.s32 2, %v756
  %v758 = vrot.slane %v745, %v757
  %v762 = vmul.f32 %v750, %v721
  %v763 = vmul.f32 %v754, %v722
  %v764 = vmul.f32 %v758, %v723
  %v765 = vmul.f32 %v750, %v724
  %v766 = vmul.f32 %v754, %v725
  %v767 = vmul.f32 %v758, %v726
  %v768 = vmul.f32 %v750, %v727
  %v769 = vmul.f32 %v754, %v728
  %v770 = vmul.f32 %v758, %v729
  %v771 = vmul.f32 %v750, %v730
  %v772 = vmul.f32 %v754, %v731
  %v773 = vmul.f32 %v758, %v732
  %v774 = vsel %vm733, %v721, %v762
  %v775 = vsel %vm734, %v722, %v763
  %v776 = vsel %vm735, %v723, %v764
  %v777 = vsel %vm736, %v724, %v765
  %v778 = vsel %vm737, %v725, %v766
  %v779 = vsel %vm738, %v726, %v767
  %v780 = vsel %vm739, %v727, %v768
  %v781 = vsel %vm740, %v728, %v769
  %v782 = vsel %vm741, %v729, %v770
  %v783 = vsel %vm742, %v730, %v771
  %v784 = vsel %vm743, %v731, %v772
  %v785 = vsel %vm744, %v732, %v773
  %v798 = vrot.slane %v774, 1
  %v799 = vrot.slane %v777, 1
  %v800 = vsel %vm606, %v798, %v799
  %v801 = vrot.slane %v775, 1
  %v802 = vrot.slane %v778, 1
  %v803 = vsel %vm606, %v801, %v802
  %v804 = vrot.slane %v776, 1
  %v805 = vrot.slane %v779, 1
  %v806 = vsel %vm606, %v804, %v805
  %v807 = vrot.slane %v780, 1
  %v808 = vrot.slane %v783, 1
  %v809 = vsel %vm606, %v807, %v808
  %v810 = vrot.slane %v781, 1
  %v811 = vrot.slane %v784, 1
  %v812 = vsel %vm606, %v810, %v811
  %v813 = vrot.slane %v782, 1
  %v814 = vrot.slane %v785, 1
  %v815 = vsel %vm606, %v813, %v814
  %v828 = vmax.f32 %v774, %v800
  %v829 = vmax.f32 %v775, %v803
  %v830 = vmax.f32 %v776, %v806
  %v831 = vmax.f32 %v777, %v799
  %v832 = vmax.f32 %v778, %v802
  %v833 = vmax.f32 %v779, %v805
  %v834 = vmax.f32 %v780, %v809
  %v835 = vmax.f32 %v781, %v812
  %v836 = vmax.f32 %v782, %v815
  %v837 = vmax.f32 %v783, %v808
  %v838 = vmax.f32 %v784, %v811
  %v839 = vmax.f32 %v785, %v814
  %v840 = vrot.slane %v774, 2
  %v841 = vrot.slane %v777, 2
  %v842 = vsel %vm661, %v840, %v841
  %v843 = vrot.slane %v775, 2
  %v844 = vrot.slane %v778, 2
  %v845 = vsel %vm661, %v843, %v844
  %v846 = vrot.slane %v776, 2
  %v847 = vrot.slane %v779, 2
  %v848 = vsel %vm661, %v846, %v847
  %v849 = vrot.slane %v780, 2
  %v850 = vrot.slane %v783, 2
  %v851 = vsel %vm661, %v849, %v850
  %v852 = vrot.slane %v781, 2
  %v853 = vrot.slane %v784, 2
  %v854 = vsel %vm661, %v852, %v853
  %v855 = vrot.slane %v782, 2
  %v856 = vrot.slane %v785, 2
  %v857 = vsel %vm661, %v855, %v856
  %v870 = vmax.f32 %v828, %v842
  %v871 = vmax.f32 %v829, %v845
  %v872 = vmax.f32 %v830, %v848
  %v873 = vmax.f32 %v831, %v841
  %v874 = vmax.f32 %v832, %v844
  %v875 = vmax.f32 %v833, %v847
  %v876 = vmax.f32 %v834, %v851
  %v877 = vmax.f32 %v835, %v854
  %v878 = vmax.f32 %v836, %v857
  %v879 = vmax.f32 %v837, %v850
  %v880 = vmax.f32 %v838, %v853
  %v881 = vmax.f32 %v839, %v856
  %v888 = vrot.slane %v870, 1
  %v889 = vrot.slane %v871, 1
  %v890 = vrot.slane %v872, 1
  %v891 = vrot.slane %v876, 1
  %v892 = vrot.slane %v877, 1
  %v893 = vrot.slane %v878, 1
  %v900 = vrot.slane %v870, 2
  %v901 = vrot.slane %v871, 2
  %v902 = vrot.slane %v872, 2
  %v903 = vrot.slane %v876, 2
  %v904 = vrot.slane %v877, 2
  %v905 = vrot.slane %v878, 2
  %v912 = vrot.slane %v870, 3
  %v913 = vrot.slane %v871, 3
  %v914 = vrot.slane %v872, 3
  %v915 = vrot.slane %v876, 3
  %v916 = vrot.slane %v877, 3
  %v917 = vrot.slane %v878, 3
  %v930 = vrot.slane %v873, 4
  %v931 = vrot.slane %v874, 4
  %v932 = vrot.slane %v875, 4
  %v933 = vrot.slane %v879, 4
  %v934 = vrot.slane %v880, 4
  %v935 = vrot.slane %v881, 4
  %v942 = vrot.slane %v873, 5
  %v943 = vrot.slane %v874, 5
  %v944 = vrot.slane %v875, 5
  %v945 = vrot.slane %v879, 5
  %v946 = vrot.slane %v880, 5
  %v947 = vrot.slane %v881, 5
  %vm954 = vcmask 1040384
  %v955 = vsel %vm954, %v870, %v888
  %v956 = vsel %vm954, %v871, %v889
  %v957 = vsel %vm954, %v872, %v890
  %v958 = vsel %vm954, %v876, %v891
  %v959 = vsel %vm954, %v877, %v892
  %v960 = vsel %vm954, %v878, %v893
  %vm961 = vcmask 1041408
  %v962 = vsel %vm961, %v955, %v900
  %v963 = vsel %vm961, %v956, %v901
  %v964 = vsel %vm961, %v957, %v902
  %v965 = vsel %vm961, %v958, %v903
  %v966 = vsel %vm961, %v959, %v904
  %v967 = vsel %vm961, %v960, %v905
  %vm968 = vcmask 1042432
  %v969 = vsel %vm968, %v962, %v912
  %v970 = vsel %vm968, %v963, %v913
  %v971 = vsel %vm968, %v964, %v914
  %v972 = vsel %vm968, %v965, %v915
  %v973 = vsel %vm968, %v966, %v916
  %v974 = vsel %vm968, %v967, %v917
  %vm975 = vcmask 1043456
  %v976 = vsel %vm975, %v969, %v930
  %v977 = vsel %vm975, %v970, %v931
  %v978 = vsel %vm975, %v971, %v932
  %v979 = vsel %vm975, %v972, %v933
  %v980 = vsel %vm975, %v973, %v934
  %v981 = vsel %vm975, %v974, %v935
  %vm982 = vcmask 1044480
  %v983 = vsel %vm982, %v976, %v942
  %v984 = vsel %vm982, %v977, %v943
  %v985 = vsel %vm982, %v978, %v944
  %v986 = vsel %vm982, %v979, %v945
  %v987 = vsel %vm982, %v980, %v946
  %v988 = vsel %vm982, %v981, %v947
  %995 = vrot.lane.b32.xlu0 %v983, 100
  %v996 = vpop.permute.xlu0 %995
  %997 = vrot.lane.b32.xlu0 %v984, 100
  %v998 = vpop.permute.xlu0 %997
  %999 = vrot.lane.b32.xlu0 %v985, 100
  %v1000 = vpop.permute.xlu0 %999
  %1001 = vrot.lane.b32.xlu0 %v986, 100
  %v1002 = vpop.permute.xlu0 %1001
  %1003 = vrot.lane.b32.xlu0 %v987, 100
  %v1004 = vpop.permute.xlu0 %1003
  %1005 = vrot.lane.b32.xlu0 %v988, 100
  %v1006 = vpop.permute.xlu0 %1005
  %vm1007 = vcmask 818176
  %v1008 = vsel %vm1007, %v996, %v998
  %v1009 = vsel %vm1007, %v998, %v1000
  %v1010 = vsel %vm1007, %v1002, %v1004
  %v1011 = vsel %vm1007, %v1004, %v1006
  %v1018 = vmax.f32 %v983, %v1008
  %v1019 = vmax.f32 %v984, %v1009
  %v1020 = vmax.f32 %v985, %v1000
  %v1021 = vmax.f32 %v986, %v1010
  %v1022 = vmax.f32 %v987, %v1011
  %v1023 = vmax.f32 %v988, %v1006
  %1024 = vrot.lane.b32.xlu0 %v983, 72
  %v1025 = vpop.permute.xlu0 %1024
  %1026 = vrot.lane.b32.xlu0 %v984, 72
  %v1027 = vpop.permute.xlu0 %1026
  %1028 = vrot.lane.b32.xlu0 %v985, 72
  %v1029 = vpop.permute.xlu0 %1028
  %1030 = vrot.lane.b32.xlu0 %v986, 72
  %v1031 = vpop.permute.xlu0 %1030
  %1032 = vrot.lane.b32.xlu0 %v987, 72
  %v1033 = vpop.permute.xlu0 %1032
  %1034 = vrot.lane.b32.xlu0 %v988, 72
  %v1035 = vpop.permute.xlu0 %1034
  %vm1036 = vcmask 588800
  %v1037 = vsel %vm1036, %v1025, %v1027
  %v1038 = vsel %vm1036, %v1027, %v1029
  %v1039 = vsel %vm1036, %v1031, %v1033
  %v1040 = vsel %vm1036, %v1033, %v1035
  %v1047 = vmax.f32 %v1018, %v1037
  %v1048 = vmax.f32 %v1019, %v1038
  %v1049 = vmax.f32 %v1020, %v1029
  %v1050 = vmax.f32 %v1021, %v1039
  %v1051 = vmax.f32 %v1022, %v1040
  %v1052 = vmax.f32 %v1023, %v1035
  %1055 = vrot.lane.b32.xlu0 %v1047, 100
  %v1056 = vpop.permute.xlu0 %1055
  %1057 = vrot.lane.b32.xlu0 %v1050, 100
  %v1058 = vpop.permute.xlu0 %1057
  %1063 = vrot.lane.b32.xlu0 %v1047, 72
  %v1064 = vpop.permute.xlu0 %1063
  %1065 = vrot.lane.b32.xlu0 %v1048, 72
  %v1066 = vpop.permute.xlu0 %1065
  %1067 = vrot.lane.b32.xlu0 %v1050, 72
  %v1068 = vpop.permute.xlu0 %1067
  %1069 = vrot.lane.b32.xlu0 %v1051, 72
  %v1070 = vpop.permute.xlu0 %1069
  %v1071 = vsel %vm1036, %v1064, %v1066
  %v1072 = vsel %vm1036, %v1068, %v1070
  %1075 = vrot.lane.b32.xlu0 %v1048, 44
  %v1076 = vpop.permute.xlu0 %1075
  %1077 = vrot.lane.b32.xlu0 %v1051, 44
  %v1078 = vpop.permute.xlu0 %1077
  %1081 = vrot.lane.b32.xlu0 %v1048, 16
  %v1082 = vpop.permute.xlu0 %1081
  %1083 = vrot.lane.b32.xlu0 %v1051, 16
  %v1084 = vpop.permute.xlu0 %1083
  %1089 = vrot.lane.b32.xlu0 %v1049, 116
  %v1090 = vpop.permute.xlu0 %1089
  %1091 = vrot.lane.b32.xlu0 %v1052, 116
  %v1092 = vpop.permute.xlu0 %1091
  %vm1095 = vcmask 228352
  %v1096 = vsel %vm1095, %v1047, %v1056
  %v1097 = vsel %vm1095, %v1050, %v1058
  %vm1098 = vcmask 457728
  %v1099 = vsel %vm1098, %v1096, %v1071
  %v1100 = vsel %vm1098, %v1097, %v1072
  %vm1101 = vcmask 687104
  %v1102 = vsel %vm1101, %v1099, %v1076
  %v1103 = vsel %vm1101, %v1100, %v1078
  %vm1104 = vcmask 916480
  %v1105 = vsel %vm1104, %v1102, %v1082
  %v1106 = vsel %vm1104, %v1103, %v1084
  %vm1107 = vcmask 97280
  %v1108 = vsel %vm1107, %v1082, %v1090
  %v1109 = vsel %vm1107, %v1084, %v1092
  %v1114 = vcombine.low %v1105, %v1108
  %v1115 = vcombine.high %v1105, %v1108
  %v1117 = vunpack.c.l.s4 1983009808
  %v1118 = vunpack.c.0.s8 %v1117
  %v1119 = vlaneseq
  %v1120 = vshrl.u32 %v1119, 7
  %v1121 = vsub.s32 %v1118, %v1120
  %v1122 = vrot.slane %v1114, %v1121
  %v1124 = vunpack.c.l.s4 1983009808
  %v1125 = vunpack.c.0.s8 %v1124
  %v1126 = vlaneseq
  %v1127 = vshrl.u32 %v1126, 7
  %v1128 = vsub.s32 %v1125, %v1127
  %v1129 = vrot.slane %v1115, %v1128
  %v1130 = vcombine.high %v1122, %v1122
  %v1131 = vcombine.low %v1106, %v1109
  %v1132 = vcombine.high %v1106, %v1109
  %v1134 = vunpack.c.l.s4 1983009808
  %v1135 = vunpack.c.0.s8 %v1134
  %v1136 = vlaneseq
  %v1137 = vshrl.u32 %v1136, 7
  %v1138 = vsub.s32 %v1135, %v1137
  %v1139 = vrot.slane %v1131, %v1138
  %v1141 = vunpack.c.l.s4 1983009808
  %v1142 = vunpack.c.0.s8 %v1141
  %v1143 = vlaneseq
  %v1144 = vshrl.u32 %v1143, 7
  %v1145 = vsub.s32 %v1142, %v1144
  %v1146 = vrot.slane %v1132, %v1145
  %v1147 = vcombine.high %v1139, %v1139
  %v1148 = vcombine.low %v1122, %v1130
  %v1149 = vcombine.low %v1129, %v1139
  %v1151 = vunpack.c.l.s4 1983009808
  %v1152 = vunpack.c.0.s8 %v1151
  %v1153 = vlaneseq
  %v1154 = vshrl.u32 %v1153, 7
  %v1155 = vsub.s32 %v1152, %v1154
  %v1156 = vrot.slane %v1148, %v1155
  %v1158 = vunpack.c.l.s4 1983009808
  %v1159 = vunpack.c.0.s8 %v1158
  %v1160 = vlaneseq
  %v1161 = vshrl.u32 %v1160, 7
  %v1162 = vsub.s32 %v1159, %v1161
  %v1163 = vrot.slane %v1149, %v1162
  %v1164 = vcombine.low %v1156, %v1163
  %v1165 = vcombine.high %v1156, %v1163
  %v1166 = vcombine.low %v1147, %v1146
  %v1168 = vunpack.c.l.s4 1983009808
  %v1169 = vunpack.c.0.s8 %v1168
  %v1170 = vlaneseq
  %v1171 = vshrl.u32 %v1170, 7
  %v1172 = vsub.s32 %v1169, %v1171
  %v1173 = vrot.slane %v1166, %v1172
  %v1174 = vcombine.high %v1173, %v1173
  %v1179 = vpack.c.bf16 %v1173, %v1164
  %v1180 = vpack.c.bf16 %v1174, %v1165
  %v1181 = vld [vmem:[%s6] sm:$0xff]
  %v1182 = vld [vmem:[%s6 + $0x8] sm:$0xf]
  %v1183 = vld [vmem:[%s6 + $0xc] sm:$0xff]
  %v1184 = vld [vmem:[%s6 + $0x14] sm:$0xf]
  %v1185 = vld [vmem:[%s6 + $0x18] sm:$0xff]
  %v1186 = vld [vmem:[%s6 + $0x20] sm:$0xf]
  %v1187 = vld [vmem:[%s6 + $0x24] sm:$0xff]
  %v1188 = vld [vmem:[%s6 + $0x2c] sm:$0xf]
  %v1189 = vld [vmem:[%s6 + $0x30] sm:$0xff]
  %v1190 = vld [vmem:[%s6 + $0x38] sm:$0xf]
  %v1191 = vld [vmem:[%s6 + $0x3c] sm:$0xff]
  %v1192 = vld [vmem:[%s6 + $0x44] sm:$0xf]
  %v1193 = vld [vmem:[%s6 + $0x48] sm:$0xff]
  %v1194 = vld [vmem:[%s6 + $0x50] sm:$0xf]
  %v1195 = vld [vmem:[%s6 + $0x54] sm:$0xff]
  %v1196 = vld [vmem:[%s6 + $0x5c] sm:$0xf]
  %v1197 = vld [vmem:[%s6 + $0x60] sm:$0xff]
  %v1198 = vld [vmem:[%s6 + $0x68] sm:$0xf]
  %v1199 = vld [vmem:[%s6 + $0x6c] sm:$0xff]
  %v1200 = vld [vmem:[%s6 + $0x74] sm:$0xf]
  %v1201 = vld [vmem:[%s6 + $0x78] sm:$0xff]
  %v1202 = vld [vmem:[%s6 + $0x80] sm:$0xf]
  %v1203 = vld [vmem:[%s6 + $0x84] sm:$0xff]
  %v1204 = vld [vmem:[%s6 + $0x8c] sm:$0xf]
  %v1205 = vld [vmem:[%s6 + $0x90] sm:$0xff]
  %v1206 = vld [vmem:[%s6 + $0x98] sm:$0xf]
  %v1207 = vld [vmem:[%s6 + $0x9c] sm:$0xff]
  %v1208 = vld [vmem:[%s6 + $0xa4] sm:$0xf]
  %v1209 = vld [vmem:[%s6 + $0xa8] sm:$0xff]
  %v1210 = vld [vmem:[%s6 + $0xb0] sm:$0xf]
  %v1211 = vld [vmem:[%s6 + $0xb4] sm:$0xff]
  %v1212 = vld [vmem:[%s6 + $0xbc] sm:$0xf]
  %v1213 = vld [vmem:[%s6 + $0xc0] sm:$0xff]
  %v1214 = vld [vmem:[%s6 + $0xc8] sm:$0xf]
  %v1215 = vld [vmem:[%s6 + $0xcc] sm:$0xff]
  %v1216 = vld [vmem:[%s6 + $0xd4] sm:$0xf]
  %v1217 = vld [vmem:[%s6 + $0xd8] sm:$0xff]
  %v1218 = vld [vmem:[%s6 + $0xe0] sm:$0xf]
  %v1219 = vld [vmem:[%s6 + $0xe4] sm:$0xff]
  %v1220 = vld [vmem:[%s6 + $0xec] sm:$0xf]
  %v1221 = vld [vmem:[%s6 + $0xf0] sm:$0xff]
  %v1222 = vld [vmem:[%s6 + $0xf8] sm:$0xf]
  %v1223 = vld [vmem:[%s7] sm:$0x7]
  %v1225 = vlaneseq
  %v1226 = vshrl.u32 %v1225, 7
  %v1227 = vsub.s32 0, %v1226
  %v1228 = vrot.slane %v1223, %v1227
  %v1229 = vlaneseq
  %v1230 = vshrl.u32 %v1229, 7
  %v1231 = vsub.s32 1, %v1230
  %v1232 = vrot.slane %v1223, %v1231
  %v1233 = vlaneseq
  %v1234 = vshrl.u32 %v1233, 7
  %v1235 = vsub.s32 2, %v1234
  %v1236 = vrot.slane %v1223, %v1235
  %v1282 = vunpack.c.l.b16 %v1181
  %v1283 = vunpack.c.h.b16 %v1181
  %v1284 = vunpack.c.l.b16 %v1182
  %v1285 = vunpack.c.l.b16 %v1183
  %v1286 = vunpack.c.h.b16 %v1183
  %v1287 = vunpack.c.l.b16 %v1184
  %v1288 = vunpack.c.l.b16 %v1185
  %v1289 = vunpack.c.h.b16 %v1185
  %v1290 = vunpack.c.l.b16 %v1186
  %v1291 = vunpack.c.l.b16 %v1187
  %v1292 = vunpack.c.h.b16 %v1187
  %v1293 = vunpack.c.l.b16 %v1188
  %v1294 = vunpack.c.l.b16 %v1189
  %v1295 = vunpack.c.h.b16 %v1189
  %v1296 = vunpack.c.l.b16 %v1190
  %v1297 = vunpack.c.l.b16 %v1191
  %v1298 = vunpack.c.h.b16 %v1191
  %v1299 = vunpack.c.l.b16 %v1192
  %v1300 = vunpack.c.l.b16 %v1193
  %v1301 = vunpack.c.h.b16 %v1193
  %v1302 = vunpack.c.l.b16 %v1194
  %v1303 = vunpack.c.l.b16 %v1195
  %v1304 = vunpack.c.h.b16 %v1195
  %v1305 = vunpack.c.l.b16 %v1196
  %v1306 = vunpack.c.l.b16 %v1197
  %v1307 = vunpack.c.h.b16 %v1197
  %v1308 = vunpack.c.l.b16 %v1198
  %v1309 = vunpack.c.l.b16 %v1199
  %v1310 = vunpack.c.h.b16 %v1199
  %v1311 = vunpack.c.l.b16 %v1200
  %v1312 = vunpack.c.l.b16 %v1201
  %v1313 = vunpack.c.h.b16 %v1201
  %v1314 = vunpack.c.l.b16 %v1202
  %v1315 = vunpack.c.l.b16 %v1203
  %v1316 = vunpack.c.h.b16 %v1203
  %v1317 = vunpack.c.l.b16 %v1204
  %v1318 = vunpack.c.l.b16 %v1205
  %v1319 = vunpack.c.h.b16 %v1205
  %v1320 = vunpack.c.l.b16 %v1206
  %v1321 = vunpack.c.l.b16 %v1207
  %v1322 = vunpack.c.h.b16 %v1207
  %v1323 = vunpack.c.l.b16 %v1208
  %v1324 = vunpack.c.l.b16 %v1209
  %v1325 = vunpack.c.h.b16 %v1209
  %v1326 = vunpack.c.l.b16 %v1210
  %v1327 = vunpack.c.l.b16 %v1211
  %v1328 = vunpack.c.h.b16 %v1211
  %v1329 = vunpack.c.l.b16 %v1212
  %v1330 = vunpack.c.l.b16 %v1213
  %v1331 = vunpack.c.h.b16 %v1213
  %v1332 = vunpack.c.l.b16 %v1214
  %v1333 = vunpack.c.l.b16 %v1215
  %v1334 = vunpack.c.h.b16 %v1215
  %v1335 = vunpack.c.l.b16 %v1216
  %v1336 = vunpack.c.l.b16 %v1217
  %v1337 = vunpack.c.h.b16 %v1217
  %v1338 = vunpack.c.l.b16 %v1218
  %v1339 = vunpack.c.l.b16 %v1219
  %v1340 = vunpack.c.h.b16 %v1219
  %v1341 = vunpack.c.l.b16 %v1220
  %v1342 = vunpack.c.l.b16 %v1221
  %v1343 = vunpack.c.h.b16 %v1221
  %v1344 = vunpack.c.l.b16 %v1222
  %v1345 = vpack.c.b16 %v1285, %v1282
  %v1346 = vpack.c.b16 %v1286, %v1283
  %v1347 = vpack.c.b16 %v1287, %v1284
  %v1348 = vpack.c.b16 %v1291, %v1288
  %v1349 = vpack.c.b16 %v1292, %v1289
  %v1350 = vpack.c.b16 %v1293, %v1290
  %v1351 = vpack.c.b16 %v1297, %v1294
  %v1352 = vpack.c.b16 %v1298, %v1295
  %v1353 = vpack.c.b16 %v1299, %v1296
  %v1354 = vpack.c.b16 %v1303, %v1300
  %v1355 = vpack.c.b16 %v1304, %v1301
  %v1356 = vpack.c.b16 %v1305, %v1302
  %v1357 = vpack.c.b16 %v1309, %v1306
  %v1358 = vpack.c.b16 %v1310, %v1307
  %v1359 = vpack.c.b16 %v1311, %v1308
  %v1360 = vpack.c.b16 %v1315, %v1312
  %v1361 = vpack.c.b16 %v1316, %v1313
  %v1362 = vpack.c.b16 %v1317, %v1314
  %v1363 = vpack.c.b16 %v1321, %v1318
  %v1364 = vpack.c.b16 %v1322, %v1319
  %v1365 = vpack.c.b16 %v1323, %v1320
  %v1366 = vpack.c.b16 %v1327, %v1324
  %v1367 = vpack.c.b16 %v1328, %v1325
  %v1368 = vpack.c.b16 %v1329, %v1326
  %v1369 = vpack.c.b16 %v1333, %v1330
  %v1370 = vpack.c.b16 %v1334, %v1331
  %v1371 = vpack.c.b16 %v1335, %v1332
  %v1372 = vpack.c.b16 %v1339, %v1336
  %v1373 = vpack.c.b16 %v1340, %v1337
  %v1374 = vpack.c.b16 %v1341, %v1338
  %v1375 = vpack.c.b16 %v1342, %v1342
  %v1376 = vpack.c.b16 %v1343, %v1343
  %v1377 = vpack.c.b16 %v1344, %v1344
  %vm1408 = vcmask 326656
  %v1410 = vsel %vm1408, %v1180, 0
  %v1413 = vsel %vm975, %v1375, 0
  %v1416 = vsel %vm975, %v1376, 0
  %v1419 = vsel %vm975, %v1377, 0
  %1421 = vmatprep.subr.bf16.mxu0 %v1346
  %1422 = vmatpush1.bf16.msra.mxu0 %v1345
  %1423 = vmatprep.subr.bf16.mxu0 %v1349
  %1424 = vmatpush1.bf16.msra.mxu0 %v1348
  %1425 = vmatprep.subr.bf16.mxu0 %v1352
  %1426 = vmatpush1.bf16.msra.mxu0 %v1351
  %1427 = vmatprep.subr.bf16.mxu0 %v1355
  %1428 = vmatpush1.bf16.msra.mxu0 %v1354
  %1429 = vmatprep.subr.bf16.mxu0 %v1358
  %1430 = vmatpush1.bf16.msra.mxu0 %v1357
  %1431 = vmatprep.subr.bf16.mxu0 %v1361
  %1432 = vmatpush1.bf16.msra.mxu0 %v1360
  %1433 = vmatprep.subr.bf16.mxu0 %v1364
  %1434 = vmatpush1.bf16.msra.mxu0 %v1363
  %1435 = vmatprep.subr.bf16.mxu0 %v1367
  %1436 = vmatpush1.bf16.msra.mxu0 %v1366
  %1437 = vmatprep.subr.bf16.mxu0 %v1370
  %1438 = vmatpush1.bf16.msra.mxu0 %v1369
  %1439 = vmatprep.subr.bf16.mxu0 %v1373
  %1440 = vmatpush1.bf16.msra.mxu0 %v1372
  %1441 = vmatprep.subr.bf16.mxu0 %v1416
  %1442 = vmatpush1.bf16.msra.mxu0 %v1413
  %1443 = vmatprep.subr.bf16.mxu0 0
  %1444 = vmatpush1.bf16.msra.mxu0 0
  %1445 = vmatprep.subr.bf16.mxu0 0
  %1446 = vmatpush1.bf16.msra.mxu0 0
  %1447 = vmatprep.subr.bf16.mxu0 0
  %1448 = vmatpush1.bf16.msra.mxu0 0
  %1449 = vmatprep.subr.bf16.mxu0 0
  %1450 = vmatpush1.bf16.msra.mxu0 0
  %1451 = vmatprep.subr.bf16.mxu0 0
  %1452 = vmatpush1.bf16.msra.mxu0 0
  %1453 = vmatprep.mubr.bf16.mxu0 %v1410
  %1454 = vmatmul.mubr.bf16.gmra.mrb[0].mxu0 %v1179
  %v1455 = vpop.f32.mrb[0].mxu0
  %v1456 = vadd.f32 %v1228, %v1455
  %v1457 = vpop.f32.mrb[0].mxu0
  %v1458 = vadd.f32 %v1232, %v1457
  %v1459 = vpop.f32.mrb[0].mxu0
  %v1460 = vadd.f32 %v1228, %v1459
  %v1461 = vpop.f32.mrb[0].mxu0
  %v1462 = vadd.f32 %v1232, %v1461
  %1463 = vdwg.mxu0
  %1464 = vmatprep.subr.bf16.mxu0 0
  %1465 = vmatpush1.bf16.msra.mxu0 %v1347
  %1466 = vmatprep.subr.bf16.mxu0 0
  %1467 = vmatpush1.bf16.msra.mxu0 %v1350
  %1468 = vmatprep.subr.bf16.mxu0 0
  %1469 = vmatpush1.bf16.msra.mxu0 %v1353
  %1470 = vmatprep.subr.bf16.mxu0 0
  %1471 = vmatpush1.bf16.msra.mxu0 %v1356
  %1472 = vmatprep.subr.bf16.mxu0 0
  %1473 = vmatpush1.bf16.msra.mxu0 %v1359
  %1474 = vmatprep.subr.bf16.mxu0 0
  %1475 = vmatpush1.bf16.msra.mxu0 %v1362
  %1476 = vmatprep.subr.bf16.mxu0 0
  %1477 = vmatpush1.bf16.msra.mxu0 %v1365
  %1478 = vmatprep.subr.bf16.mxu0 0
  %1479 = vmatpush1.bf16.msra.mxu0 %v1368
  %1480 = vmatprep.subr.bf16.mxu0 0
  %1481 = vmatpush1.bf16.msra.mxu0 %v1371
  %1482 = vmatprep.subr.bf16.mxu0 0
  %1483 = vmatpush1.bf16.msra.mxu0 %v1374
  %1484 = vmatprep.subr.bf16.mxu0 0
  %1485 = vmatpush1.bf16.msra.mxu0 %v1419
  %1486 = vmatprep.subr.bf16.mxu0 0
  %1487 = vmatpush1.bf16.msra.mxu0 0
  %1488 = vmatprep.subr.bf16.mxu0 0
  %1489 = vmatpush1.bf16.msra.mxu0 0
  %1490 = vmatprep.subr.bf16.mxu0 0
  %1491 = vmatpush1.bf16.msra.mxu0 0
  %1492 = vmatprep.subr.bf16.mxu0 0
  %1493 = vmatpush1.bf16.msra.mxu0 0
  %1494 = vmatprep.subr.bf16.mxu0 0
  %1495 = vmatpush1.bf16.msra.mxu0 0
  %1496 = vmatprep.mubr.bf16.mxu0 %v1410
  %1497 = vmatmul.mubr.bf16.gmra.mrb[0].mxu0 %v1179
  %v1498 = vpop.f32.mrb[0].mxu0
  %v1499 = vadd.f32 %v1236, %v1498
  %v1500 = vpop.f32.mrb[0].mxu0
  %v1501 = vpop.f32.mrb[0].mxu0
  %v1502 = vadd.f32 %v1236, %v1501
  %v1503 = vpop.f32.mrb[0].mxu0
  %1504 = vdwg.mxu0
  %vm1505 = vcmp.gt.f32.partialorder %v1456, 0.0
  %vm1506 = vcmp.gt.f32.partialorder %v1458, 0.0
  %vm1507 = vcmp.gt.f32.partialorder %v1499, 0.0
  %vm1508 = vcmp.gt.f32.partialorder %v1460, 0.0
  %vm1509 = vcmp.gt.f32.partialorder %v1462, 0.0
  %vm1510 = vcmp.gt.f32.partialorder %v1502, 0.0
  %v1511 = vld [vmem:[%s8] sm:$0x7]
  %v1513 = vlaneseq
  %v1514 = vshrl.u32 %v1513, 7
  %v1515 = vsub.s32 0, %v1514
  %v1516 = vrot.slane %v1511, %v1515
  %v1517 = vlaneseq
  %v1518 = vshrl.u32 %v1517, 7
  %v1519 = vsub.s32 1, %v1518
  %v1520 = vrot.slane %v1511, %v1519
  %v1521 = vlaneseq
  %v1522 = vshrl.u32 %v1521, 7
  %v1523 = vsub.s32 2, %v1522
  %v1524 = vrot.slane %v1511, %v1523
  %v1528 = vmul.f32 %v1516, %v1456
  %v1529 = vmul.f32 %v1520, %v1458
  %v1530 = vmul.f32 %v1524, %v1499
  %v1531 = vmul.f32 %v1516, %v1460
  %v1532 = vmul.f32 %v1520, %v1462
  %v1533 = vmul.f32 %v1524, %v1502
  %v1534 = vsel %vm1505, %v1456, %v1528
  %v1535 = vsel %vm1506, %v1458, %v1529
  %v1536 = vsel %vm1507, %v1499, %v1530
  %v1537 = vsel %vm1508, %v1460, %v1531
  %v1538 = vsel %vm1509, %v1462, %v1532
  %v1539 = vsel %vm1510, %v1502, %v1533
  %v1546 = vcombine.low %v1534, %v1535
  %v1547 = vcombine.high %v1534, %v1535
  %v1548 = vcombine.high %v1536, %v1536
  %v1550 = vunpack.c.l.s4 1983009808
  %v1551 = vunpack.c.0.s8 %v1550
  %v1552 = vlaneseq
  %v1553 = vshrl.u32 %v1552, 7
  %v1554 = vsub.s32 %v1551, %v1553
  %v1555 = vrot.slane %v1546, %v1554
  %v1557 = vunpack.c.l.s4 1983009808
  %v1558 = vunpack.c.0.s8 %v1557
  %v1559 = vlaneseq
  %v1560 = vshrl.u32 %v1559, 7
  %v1561 = vsub.s32 %v1558, %v1560
  %v1562 = vrot.slane %v1547, %v1561
  %v1564 = vunpack.c.l.s4 1983009808
  %v1565 = vunpack.c.0.s8 %v1564
  %v1566 = vlaneseq
  %v1567 = vshrl.u32 %v1566, 7
  %v1568 = vsub.s32 %v1565, %v1567
  %v1569 = vrot.slane %v1536, %v1568
  %v1571 = vunpack.c.l.s4 1983009808
  %v1572 = vunpack.c.0.s8 %v1571
  %v1573 = vlaneseq
  %v1574 = vshrl.u32 %v1573, 7
  %v1575 = vsub.s32 %v1572, %v1574
  %v1576 = vrot.slane %v1548, %v1575
  %v1577 = vcombine.low %v1555, %v1569
  %v1578 = vcombine.high %v1555, %v1569
  %v1579 = vcombine.low %v1562, %v1576
  %v1580 = vcombine.high %v1562, %v1576
  %v1581 = vcombine.low %v1537, %v1538
  %v1583 = vunpack.c.l.s4 1983009808
  %v1584 = vunpack.c.0.s8 %v1583
  %v1585 = vlaneseq
  %v1586 = vshrl.u32 %v1585, 7
  %v1587 = vsub.s32 %v1584, %v1586
  %v1588 = vrot.slane %v1581, %v1587
  %v1590 = vunpack.c.l.s4 1983009808
  %v1591 = vunpack.c.0.s8 %v1590
  %v1592 = vlaneseq
  %v1593 = vshrl.u32 %v1592, 7
  %v1594 = vsub.s32 %v1591, %v1593
  %v1595 = vrot.slane %v1539, %v1594
  %v1596 = vcombine.low %v1588, %v1595
  %v1597 = vcombine.high %v1588, %v1595
  %vm1604 = vcmask 1042434
  %vm1605 = vmor %vm954, %vm1604
  %vm1606 = vcmask 1044484
  %vm1607 = vmor %vm1605, %vm1606
  %vm1608 = vcmask 1046534
  %vm1609 = vmor %vm1607, %vm1608
  %v1610 = vrot.slane %v1577, 7
  %v1611 = vrot.slane %v1610, 2
  %v1612 = vrot.slane %v1578, 7
  %v1613 = vsel %vm1609, %v1611, %v1612
  %v1614 = vrot.slane %v1612, 2
  %v1615 = vrot.slane %v1580, 7
  %v1616 = vrot.slane %v1615, 2
  %v1617 = vrot.slane %v1596, 7
  %v1618 = vsel %vm1609, %v1616, %v1617
  %v1619 = vrot.slane %v1617, 2
  %v1624 = vmax.f32 %v1577, %v1613
  %v1625 = vmax.f32 %v1578, %v1614
  %v1626 = vmax.f32 %v1580, %v1618
  %v1627 = vmax.f32 %v1596, %v1619
  %v1628 = vmax.f32 %v1624, %v1578
  %v1629 = vmax.f32 %v1625, %v1579
  %v1630 = vmax.f32 %v1626, %v1596
  %v1631 = vmax.f32 %v1627, %v1597
  %v1634 = vlaneseq
  %v1635 = vshrl.u32 %v1634, 7
  %v1636 = vsub.s32 0, %v1635
  %v1637 = vrot.slane %v1628, %v1636
  %v1638 = vlaneseq
  %v1639 = vshrl.u32 %v1638, 7
  %v1640 = vsub.s32 2, %v1639
  %v1641 = vrot.slane %v1628, %v1640
  %v1642 = vlaneseq
  %v1643 = vshrl.u32 %v1642, 7
  %v1644 = vsub.s32 0, %v1643
  %v1645 = vrot.slane %v1630, %v1644
  %v1646 = vlaneseq
  %v1647 = vshrl.u32 %v1646, 7
  %v1648 = vsub.s32 2, %v1647
  %v1649 = vrot.slane %v1630, %v1648
  %v1656 = vlaneseq
  %v1657 = vshrl.u32 %v1656, 7
  %v1658 = vsub.s32 0, %v1657
  %v1659 = vrot.slane %v1629, %v1658
  %v1660 = vlaneseq
  %v1661 = vshrl.u32 %v1660, 7
  %v1662 = vsub.s32 2, %v1661
  %v1663 = vrot.slane %v1629, %v1662
  %v1664 = vlaneseq
  %v1665 = vshrl.u32 %v1664, 7
  %v1666 = vsub.s32 0, %v1665
  %v1667 = vrot.slane %v1631, %v1666
  %v1668 = vlaneseq
  %v1669 = vshrl.u32 %v1668, 7
  %v1670 = vsub.s32 2, %v1669
  %v1671 = vrot.slane %v1631, %v1670
  %v1676 = vsel %vm954, %v1637, %v1659
  %v1677 = vsel %vm954, %v1641, %v1663
  %v1678 = vsel %vm954, %v1645, %v1667
  %v1679 = vsel %vm954, %v1649, %v1671
  %1684 = vrot.lane.b32.xlu0 %v1676, 80
  %v1685 = vpop.permute.xlu0 %1684
  %1686 = vrot.lane.b32.xlu0 %v1677, 80
  %v1687 = vpop.permute.xlu0 %1686
  %1688 = vrot.lane.b32.xlu0 %v1678, 80
  %v1689 = vpop.permute.xlu0 %1688
  %1690 = vrot.lane.b32.xlu0 %v1679, 80
  %v1691 = vpop.permute.xlu0 %1690
  %vm1692 = vcmask 654336
  %v1693 = vsel %vm1692, %v1685, %v1687
  %v1694 = vsel %vm1692, %v1689, %v1691
  %v1699 = vmax.f32 %v1676, %v1693
  %v1700 = vmax.f32 %v1677, %v1687
  %v1701 = vmax.f32 %v1678, %v1694
  %v1702 = vmax.f32 %v1679, %v1691
  %1703 = vrot.lane.b32.xlu0 %v1676, 32
  %v1704 = vpop.permute.xlu0 %1703
  %1705 = vrot.lane.b32.xlu0 %v1677, 32
  %v1706 = vpop.permute.xlu0 %1705
  %1707 = vrot.lane.b32.xlu0 %v1678, 32
  %v1708 = vpop.permute.xlu0 %1707
  %1709 = vrot.lane.b32.xlu0 %v1679, 32
  %v1710 = vpop.permute.xlu0 %1709
  %vm1711 = vcmask 261120
  %v1712 = vsel %vm1711, %v1704, %v1706
  %v1713 = vsel %vm1711, %v1708, %v1710
  %v1718 = vmax.f32 %v1699, %v1712
  %v1719 = vmax.f32 %v1700, %v1706
  %v1720 = vmax.f32 %v1701, %v1713
  %v1721 = vmax.f32 %v1702, %v1710
  %1726 = vrot.lane.b32.xlu0 %v1718, 80
  %v1727 = vpop.permute.xlu0 %1726
  %1728 = vrot.lane.b32.xlu0 %v1719, 80
  %v1729 = vpop.permute.xlu0 %1728
  %1730 = vrot.lane.b32.xlu0 %v1720, 80
  %v1731 = vpop.permute.xlu0 %1730
  %1732 = vrot.lane.b32.xlu0 %v1721, 80
  %v1733 = vpop.permute.xlu0 %1732
  %v1734 = vsel %vm1692, %v1727, %v1729
  %v1735 = vsel %vm1692, %v1731, %v1733
  %v1738 = vsel %vm137, %v1718, %v1734
  %v1739 = vsel %vm137, %v1720, %v1735
  %v1742 = vrot.slane %v1739, 7
  %vm1743 = vcmask 1041409
  %v1744 = vsel %vm1743, %v1742, %v1738
  %v1746 = vrot.slane %v1738, 1
  %v1747 = vsel %vm1743, %v1739, %v1746
  %1748 = vrot.lane.b32.xlu0 %v1747, 96
  %v1749 = vpop.permute.xlu0 %1748
  %vm1751 = vcmask 785408
  %v1752 = vsel %vm1751, %v1744, %v1749
  %v1753 = vpack.c.bf16 %v1752, %v1752
  %v1754 = vpack.c.bf16 %v1749, %v1749
  %v1755 = vld [vmem:[%s9] sm:$0xff]
  %v1756 = vld [vmem:[%s9 + $0x8] sm:$0xff]
  %v1757 = vld [vmem:[%s9 + $0x10] sm:$0xff]
  %v1758 = vld [vmem:[%s9 + $0x18] sm:$0xff]
  %v1759 = vld [vmem:[%s9 + $0x20] sm:$0xff]
  %v1760 = vld [vmem:[%s9 + $0x28] sm:$0xff]
  %v1761 = vld [vmem:[%s9 + $0x30] sm:$0xff]
  %v1762 = vld [vmem:[%s9 + $0x38] sm:$0xff]
  %v1763 = vld [vmem:[%s9 + $0x40] sm:$0xff]
  %v1764 = vld [vmem:[%s9 + $0x48] sm:$0xff]
  %v1765 = vld [vmem:[%s9 + $0x50] sm:$0xff]
  %v1766 = vld [vmem:[%s9 + $0x58] sm:$0xff]
  %v1767 = vld [vmem:[%s9 + $0x60] sm:$0xff]
  %v1768 = vld [vmem:[%s9 + $0x68] sm:$0xff]
  %v1769 = vld [vmem:[%s9 + $0x70] sm:$0xff]
  %v1770 = vld [vmem:[%s9 + $0x78] sm:$0xff]
  %v1771 = vld [vmem:[%s9 + $0x80] sm:$0xff]
  %v1772 = vld [vmem:[%s9 + $0x88] sm:$0xff]
  %v1773 = vld [vmem:[%s9 + $0x90] sm:$0xff]
  %v1774 = vld [vmem:[%s9 + $0x98] sm:$0xff]
  %v1775 = vld [vmem:[%s9 + $0xa0] sm:$0xff]
  %v1776 = vld [vmem:[%s9 + $0xa8] sm:$0xff]
  %v1777 = vld [vmem:[%s9 + $0xb0] sm:$0xff]
  %v1778 = vld [vmem:[%s9 + $0xb8] sm:$0xff]
  %v1779 = vld [vmem:[%s10] sm:$0x3]
  %v1781 = vlaneseq
  %v1782 = vshrl.u32 %v1781, 7
  %v1783 = vsub.s32 0, %v1782
  %v1784 = vrot.slane %v1779, %v1783
  %v1785 = vlaneseq
  %v1786 = vshrl.u32 %v1785, 7
  %v1787 = vsub.s32 1, %v1786
  %v1788 = vrot.slane %v1779, %v1787
  %v1815 = vunpack.c.l.b16 %v1755
  %v1816 = vunpack.c.h.b16 %v1755
  %v1817 = vunpack.c.l.b16 %v1756
  %v1818 = vunpack.c.h.b16 %v1756
  %v1819 = vunpack.c.l.b16 %v1757
  %v1820 = vunpack.c.h.b16 %v1757
  %v1821 = vunpack.c.l.b16 %v1758
  %v1822 = vunpack.c.h.b16 %v1758
  %v1823 = vunpack.c.l.b16 %v1759
  %v1824 = vunpack.c.h.b16 %v1759
  %v1825 = vunpack.c.l.b16 %v1760
  %v1826 = vunpack.c.h.b16 %v1760
  %v1827 = vunpack.c.l.b16 %v1761
  %v1828 = vunpack.c.h.b16 %v1761
  %v1829 = vunpack.c.l.b16 %v1762
  %v1830 = vunpack.c.h.b16 %v1762
  %v1831 = vunpack.c.l.b16 %v1763
  %v1832 = vunpack.c.h.b16 %v1763
  %v1833 = vunpack.c.l.b16 %v1764
  %v1834 = vunpack.c.h.b16 %v1764
  %v1835 = vunpack.c.l.b16 %v1765
  %v1836 = vunpack.c.h.b16 %v1765
  %v1837 = vunpack.c.l.b16 %v1766
  %v1838 = vunpack.c.h.b16 %v1766
  %v1839 = vunpack.c.l.b16 %v1767
  %v1840 = vunpack.c.h.b16 %v1767
  %v1841 = vunpack.c.l.b16 %v1768
  %v1842 = vunpack.c.h.b16 %v1768
  %v1843 = vunpack.c.l.b16 %v1769
  %v1844 = vunpack.c.h.b16 %v1769
  %v1845 = vunpack.c.l.b16 %v1770
  %v1846 = vunpack.c.h.b16 %v1770
  %v1847 = vunpack.c.l.b16 %v1771
  %v1848 = vunpack.c.h.b16 %v1771
  %v1849 = vunpack.c.l.b16 %v1772
  %v1850 = vunpack.c.h.b16 %v1772
  %v1851 = vunpack.c.l.b16 %v1773
  %v1852 = vunpack.c.h.b16 %v1773
  %v1853 = vunpack.c.l.b16 %v1774
  %v1854 = vunpack.c.h.b16 %v1774
  %v1855 = vunpack.c.l.b16 %v1775
  %v1856 = vunpack.c.h.b16 %v1775
  %v1857 = vunpack.c.l.b16 %v1776
  %v1858 = vunpack.c.h.b16 %v1776
  %v1859 = vunpack.c.l.b16 %v1777
  %v1860 = vunpack.c.h.b16 %v1777
  %v1861 = vunpack.c.l.b16 %v1778
  %v1862 = vunpack.c.h.b16 %v1778
  %v1863 = vpack.c.b16 %v1817, %v1815
  %v1864 = vpack.c.b16 %v1818, %v1816
  %v1865 = vpack.c.b16 %v1821, %v1819
  %v1866 = vpack.c.b16 %v1822, %v1820
  %v1867 = vpack.c.b16 %v1825, %v1823
  %v1868 = vpack.c.b16 %v1826, %v1824
  %v1869 = vpack.c.b16 %v1829, %v1827
  %v1870 = vpack.c.b16 %v1830, %v1828
  %v1871 = vpack.c.b16 %v1833, %v1831
  %v1872 = vpack.c.b16 %v1834, %v1832
  %v1873 = vpack.c.b16 %v1837, %v1835
  %v1874 = vpack.c.b16 %v1838, %v1836
  %v1875 = vpack.c.b16 %v1841, %v1839
  %v1876 = vpack.c.b16 %v1842, %v1840
  %v1877 = vpack.c.b16 %v1845, %v1843
  %v1878 = vpack.c.b16 %v1846, %v1844
  %v1879 = vpack.c.b16 %v1849, %v1847
  %v1880 = vpack.c.b16 %v1850, %v1848
  %v1881 = vpack.c.b16 %v1853, %v1851
  %v1882 = vpack.c.b16 %v1854, %v1852
  %v1883 = vpack.c.b16 %v1857, %v1855
  %v1884 = vpack.c.b16 %v1858, %v1856
  %v1885 = vpack.c.b16 %v1861, %v1859
  %v1886 = vpack.c.b16 %v1862, %v1860
  %vm1911 = vcmask 523264
  %v1913 = vsel %vm1911, %v1754, 0
  %1915 = vmatprep.subr.bf16.mxu0 %v1864
  %1916 = vmatpush1.bf16.msra.mxu0 %v1863
  %1917 = vmatprep.subr.bf16.mxu0 %v1866
  %1918 = vmatpush1.bf16.msra.mxu0 %v1865
  %1919 = vmatprep.subr.bf16.mxu0 %v1868
  %1920 = vmatpush1.bf16.msra.mxu0 %v1867
  %1921 = vmatprep.subr.bf16.mxu0 %v1870
  %1922 = vmatpush1.bf16.msra.mxu0 %v1869
  %1923 = vmatprep.subr.bf16.mxu0 %v1872
  %1924 = vmatpush1.bf16.msra.mxu0 %v1871
  %1925 = vmatprep.subr.bf16.mxu0 %v1874
  %1926 = vmatpush1.bf16.msra.mxu0 %v1873
  %1927 = vmatprep.subr.bf16.mxu0 %v1876
  %1928 = vmatpush1.bf16.msra.mxu0 %v1875
  %1929 = vmatprep.subr.bf16.mxu0 %v1878
  %1930 = vmatpush1.bf16.msra.mxu0 %v1877
  %1931 = vmatprep.subr.bf16.mxu0 %v1880
  %1932 = vmatpush1.bf16.msra.mxu0 %v1879
  %1933 = vmatprep.subr.bf16.mxu0 %v1882
  %1934 = vmatpush1.bf16.msra.mxu0 %v1881
  %1935 = vmatprep.subr.bf16.mxu0 %v1884
  %1936 = vmatpush1.bf16.msra.mxu0 %v1883
  %1937 = vmatprep.subr.bf16.mxu0 %v1886
  %1938 = vmatpush1.bf16.msra.mxu0 %v1885
  %1939 = vmatprep.subr.bf16.mxu0 0
  %1940 = vmatpush1.bf16.msra.mxu0 0
  %1941 = vmatprep.subr.bf16.mxu0 0
  %1942 = vmatpush1.bf16.msra.mxu0 0
  %1943 = vmatprep.subr.bf16.mxu0 0
  %1944 = vmatpush1.bf16.msra.mxu0 0
  %1945 = vmatprep.subr.bf16.mxu0 0
  %1946 = vmatpush1.bf16.msra.mxu0 0
  %1947 = vmatprep.mubr.bf16.mxu0 %v1913
  %1948 = vmatmul.mubr.bf16.gmra.mrb[0].mxu0 %v1753
  %v1949 = vpop.f32.mrb[0].mxu0
  %v1950 = vadd.f32 %v1784, %v1949
  %v1951 = vpop.f32.mrb[0].mxu0
  %v1952 = vadd.f32 %v1788, %v1951
  %v1953 = vpop.f32.mrb[0].mxu0
  %v1954 = vpop.f32.mrb[0].mxu0
  %1955 = vdwg.mxu0
  %vm1956 = vcmp.gt.f32.partialorder %v1950, 0.0
  %vm1957 = vcmp.gt.f32.partialorder %v1952, 0.0
  %v1958 = vld [vmem:[%s11] sm:$0x3]
  %v1960 = vlaneseq
  %v1961 = vshrl.u32 %v1960, 7
  %v1962 = vsub.s32 0, %v1961
  %v1963 = vrot.slane %v1958, %v1962
  %v1964 = vlaneseq
  %v1965 = vshrl.u32 %v1964, 7
  %v1966 = vsub.s32 1, %v1965
  %v1967 = vrot.slane %v1958, %v1966
  %v1970 = vmul.f32 %v1963, %v1950
  %v1971 = vmul.f32 %v1967, %v1952
  %v1972 = vsel %vm1956, %v1950, %v1970
  %v1973 = vsel %vm1957, %v1952, %v1971
  %v1974 = vpack.c.bf16 %v1972, %v1972
  %v1975 = vpack.c.bf16 %v1973, %v1973
  %v1976 = vld [vmem:[%s12] sm:$0xf]
  %v1977 = vld [vmem:[%s12 + $0x4] sm:$0xf]
  %v1978 = vld [vmem:[%s12 + $0x8] sm:$0xf]
  %v1979 = vld [vmem:[%s12 + $0xc] sm:$0xf]
  %v1980 = vld [vmem:[%s12 + $0x10] sm:$0xf]
  %v1981 = vld [vmem:[%s12 + $0x14] sm:$0xf]
  %v1982 = vld [vmem:[%s12 + $0x18] sm:$0xf]
  %v1983 = vld [vmem:[%s12 + $0x1c] sm:$0xf]
  %v1984 = vld [vmem:[%s12 + $0x20] sm:$0xf]
  %v1985 = vld [vmem:[%s12 + $0x24] sm:$0xf]
  %v1986 = vld [vmem:[%s12 + $0x28] sm:$0xf]
  %v1987 = vld [vmem:[%s12 + $0x2c] sm:$0xf]
  %v1988 = vld [vmem:[%s12 + $0x30] sm:$0xf]
  %v1989 = vld [vmem:[%s12 + $0x34] sm:$0xf]
  %v1990 = vld [vmem:[%s12 + $0x38] sm:$0xf]
  %v1991 = vld [vmem:[%s12 + $0x3c] sm:$0xf]
  %v1992 = vld [vmem:[%s12 + $0x40] sm:$0xf]
  %v1993 = vld [vmem:[%s12 + $0x44] sm:$0xf]
  %v1994 = vld [vmem:[%s12 + $0x48] sm:$0xf]
  %v1995 = vld [vmem:[%s12 + $0x4c] sm:$0xf]
  %v1996 = vld [vmem:[%s12 + $0x50] sm:$0xf]
  %v1997 = vld [vmem:[%s12 + $0x54] sm:$0xf]
  %v1998 = vld [vmem:[%s12 + $0x58] sm:$0xf]
  %v1999 = vld [vmem:[%s12 + $0x5c] sm:$0xf]
  %v2000 = vld [vmem:[%s12 + $0x60] sm:$0xf]
  %v2001 = vld [vmem:[%s12 + $0x64] sm:$0xf]
  %v2002 = vld [vmem:[%s12 + $0x68] sm:$0xf]
  %v2003 = vld [vmem:[%s12 + $0x6c] sm:$0xf]
  %v2004 = vld [vmem:[%s12 + $0x70] sm:$0xf]
  %v2005 = vld [vmem:[%s12 + $0x74] sm:$0xf]
  %v2006 = vld [vmem:[%s12 + $0x78] sm:$0xf]
  %v2007 = vld [vmem:[%s12 + $0x7c] sm:$0xf]
  %v2008 = vld [vmem:[%s13] sm:$0x1]
  %v2010 = vlaneseq
  %v2011 = vshrl.u32 %v2010, 7
  %v2012 = vsub.s32 0, %v2011
  %v2013 = vrot.slane %v2008, %v2012
  %v2047 = vunpack.c.l.b16 %v1976
  %v2048 = vunpack.c.l.b16 %v1977
  %v2049 = vunpack.c.l.b16 %v1978
  %v2050 = vunpack.c.l.b16 %v1979
  %v2051 = vunpack.c.l.b16 %v1980
  %v2052 = vunpack.c.l.b16 %v1981
  %v2053 = vunpack.c.l.b16 %v1982
  %v2054 = vunpack.c.l.b16 %v1983
  %v2055 = vunpack.c.l.b16 %v1984
  %v2056 = vunpack.c.l.b16 %v1985
  %v2057 = vunpack.c.l.b16 %v1986
  %v2058 = vunpack.c.l.b16 %v1987
  %v2059 = vunpack.c.l.b16 %v1988
  %v2060 = vunpack.c.l.b16 %v1989
  %v2061 = vunpack.c.l.b16 %v1990
  %v2062 = vunpack.c.l.b16 %v1991
  %v2063 = vunpack.c.l.b16 %v1992
  %v2064 = vunpack.c.l.b16 %v1993
  %v2065 = vunpack.c.l.b16 %v1994
  %v2066 = vunpack.c.l.b16 %v1995
  %v2067 = vunpack.c.l.b16 %v1996
  %v2068 = vunpack.c.l.b16 %v1997
  %v2069 = vunpack.c.l.b16 %v1998
  %v2070 = vunpack.c.l.b16 %v1999
  %v2071 = vunpack.c.l.b16 %v2000
  %v2072 = vunpack.c.l.b16 %v2001
  %v2073 = vunpack.c.l.b16 %v2002
  %v2074 = vunpack.c.l.b16 %v2003
  %v2075 = vunpack.c.l.b16 %v2004
  %v2076 = vunpack.c.l.b16 %v2005
  %v2077 = vunpack.c.l.b16 %v2006
  %v2078 = vunpack.c.l.b16 %v2007
  %v2079 = vpack.c.b16 %v2048, %v2047
  %v2080 = vpack.c.b16 %v2050, %v2049
  %v2081 = vpack.c.b16 %v2052, %v2051
  %v2082 = vpack.c.b16 %v2054, %v2053
  %v2083 = vpack.c.b16 %v2056, %v2055
  %v2084 = vpack.c.b16 %v2058, %v2057
  %v2085 = vpack.c.b16 %v2060, %v2059
  %v2086 = vpack.c.b16 %v2062, %v2061
  %v2087 = vpack.c.b16 %v2064, %v2063
  %v2088 = vpack.c.b16 %v2066, %v2065
  %v2089 = vpack.c.b16 %v2068, %v2067
  %v2090 = vpack.c.b16 %v2070, %v2069
  %v2091 = vpack.c.b16 %v2072, %v2071
  %v2092 = vpack.c.b16 %v2074, %v2073
  %v2093 = vpack.c.b16 %v2076, %v2075
  %v2094 = vpack.c.b16 %v2078, %v2077
  %2111 = vmatprep.subr.bf16.mxu0 0
  %2112 = vmatpush1.bf16.msra.mxu0 %v2079
  %2113 = vmatprep.subr.bf16.mxu0 0
  %2114 = vmatpush1.bf16.msra.mxu0 %v2080
  %2115 = vmatprep.subr.bf16.mxu0 0
  %2116 = vmatpush1.bf16.msra.mxu0 %v2081
  %2117 = vmatprep.subr.bf16.mxu0 0
  %2118 = vmatpush1.bf16.msra.mxu0 %v2082
  %2119 = vmatprep.subr.bf16.mxu0 0
  %2120 = vmatpush1.bf16.msra.mxu0 %v2083
  %2121 = vmatprep.subr.bf16.mxu0 0
  %2122 = vmatpush1.bf16.msra.mxu0 %v2084
  %2123 = vmatprep.subr.bf16.mxu0 0
  %2124 = vmatpush1.bf16.msra.mxu0 %v2085
  %2125 = vmatprep.subr.bf16.mxu0 0
  %2126 = vmatpush1.bf16.msra.mxu0 %v2086
  %2127 = vmatprep.subr.bf16.mxu0 0
  %2128 = vmatpush1.bf16.msra.mxu0 %v2087
  %2129 = vmatprep.subr.bf16.mxu0 0
  %2130 = vmatpush1.bf16.msra.mxu0 %v2088
  %2131 = vmatprep.subr.bf16.mxu0 0
  %2132 = vmatpush1.bf16.msra.mxu0 %v2089
  %2133 = vmatprep.subr.bf16.mxu0 0
  %2134 = vmatpush1.bf16.msra.mxu0 %v2090
  %2135 = vmatprep.subr.bf16.mxu0 0
  %2136 = vmatpush1.bf16.msra.mxu0 %v2091
  %2137 = vmatprep.subr.bf16.mxu0 0
  %2138 = vmatpush1.bf16.msra.mxu0 %v2092
  %2139 = vmatprep.subr.bf16.mxu0 0
  %2140 = vmatpush1.bf16.msra.mxu0 %v2093
  %2141 = vmatprep.subr.bf16.mxu0 0
  %2142 = vmatpush1.bf16.msra.mxu0 %v2094
  %2143 = vmatprep.mubr.bf16.mxu0 %v1975
  %2144 = vmatmul.mubr.bf16.gmra.mrb[0].mxu0 %v1974
  %v2145 = vpop.f32.mrb[0].mxu0
  %v2146 = vadd.f32 %v2013, %v2145
  %v2147 = vpop.f32.mrb[0].mxu0
  %v2148 = vpop.f32.mrb[0].mxu0
  %v2149 = vpop.f32.mrb[0].mxu0
  %2150 = vdwg.mxu0
  %vm2151 = vcmp.gt.f32.partialorder %v2146, 0.0
  %v2152 = vld [vmem:[#allocation2] sm:$0x1]
  %v2154 = vlaneseq
  %v2155 = vshrl.u32 %v2154, 7
  %v2156 = vsub.s32 0, %v2155
  %v2157 = vrot.slane %v2152, %v2156
  %2158 = vset.pattern.permute.xlu0 0
  %2159 = vperm.xlu0 %2158, %v2157
  %v2160 = vpop.permute.xlu0 %2159
  %v2162 = vmul.f32 %v2160, %v2146
  %v2163 = vsel %vm2151, %v2146, %v2162
  %v2164 = vpack.c.bf16 %v2163, %v2163
  %v2165 = vld [vmem:[%s15] sm:$0xf]
  %v2166 = vld [vmem:[%s15 + $0x4] sm:$0xf]
  %v2167 = vld [vmem:[%s15 + $0x8] sm:$0xf]
  %v2168 = vld [vmem:[%s15 + $0xc] sm:$0xf]
  %v2169 = vld [vmem:[%s15 + $0x10] sm:$0xf]
  %v2170 = vld [vmem:[%s15 + $0x14] sm:$0xf]
  %v2171 = vld [vmem:[%s15 + $0x18] sm:$0xf]
  %v2172 = vld [vmem:[%s15 + $0x1c] sm:$0xf]
  %v2173 = vld [vmem:[%s15 + $0x20] sm:$0xf]
  %v2174 = vld [vmem:[%s15 + $0x24] sm:$0xf]
  %v2175 = vld [vmem:[%s15 + $0x28] sm:$0xf]
  %v2176 = vld [vmem:[%s15 + $0x2c] sm:$0xf]
  %v2177 = vld [vmem:[%s15 + $0x30] sm:$0xf]
  %v2178 = vld [vmem:[%s15 + $0x34] sm:$0xf]
  %v2179 = vld [vmem:[%s15 + $0x38] sm:$0xf]
  %v2180 = vld [vmem:[%s15 + $0x3c] sm:$0xf]
  %v2181 = vld [vmem:[%s16] sm:$0x1]
  %v2183 = vlaneseq
  %v2184 = vshrl.u32 %v2183, 7
  %v2185 = vsub.s32 0, %v2184
  %v2186 = vrot.slane %v2181, %v2185
  %v2204 = vunpack.c.l.b16 %v2165
  %v2205 = vunpack.c.l.b16 %v2166
  %v2206 = vunpack.c.l.b16 %v2167
  %v2207 = vunpack.c.l.b16 %v2168
  %v2208 = vunpack.c.l.b16 %v2169
  %v2209 = vunpack.c.l.b16 %v2170
  %v2210 = vunpack.c.l.b16 %v2171
  %v2211 = vunpack.c.l.b16 %v2172
  %v2212 = vunpack.c.l.b16 %v2173
  %v2213 = vunpack.c.l.b16 %v2174
  %v2214 = vunpack.c.l.b16 %v2175
  %v2215 = vunpack.c.l.b16 %v2176
  %v2216 = vunpack.c.l.b16 %v2177
  %v2217 = vunpack.c.l.b16 %v2178
  %v2218 = vunpack.c.l.b16 %v2179
  %v2219 = vunpack.c.l.b16 %v2180
  %v2220 = vpack.c.b16 %v2205, %v2204
  %v2221 = vpack.c.b16 %v2207, %v2206
  %v2222 = vpack.c.b16 %v2209, %v2208
  %v2223 = vpack.c.b16 %v2211, %v2210
  %v2224 = vpack.c.b16 %v2213, %v2212
  %v2225 = vpack.c.b16 %v2215, %v2214
  %v2226 = vpack.c.b16 %v2217, %v2216
  %v2227 = vpack.c.b16 %v2219, %v2218
  %2236 = vmatprep.subr.bf16.mxu0 0
  %2237 = vmatpush1.bf16.msra.mxu0 %v2220
  %2238 = vmatprep.subr.bf16.mxu0 0
  %2239 = vmatpush1.bf16.msra.mxu0 %v2221
  %2240 = vmatprep.subr.bf16.mxu0 0
  %2241 = vmatpush1.bf16.msra.mxu0 %v2222
  %2242 = vmatprep.subr.bf16.mxu0 0
  %2243 = vmatpush1.bf16.msra.mxu0 %v2223
  %2244 = vmatprep.subr.bf16.mxu0 0
  %2245 = vmatpush1.bf16.msra.mxu0 %v2224
  %2246 = vmatprep.subr.bf16.mxu0 0
  %2247 = vmatpush1.bf16.msra.mxu0 %v2225
  %2248 = vmatprep.subr.bf16.mxu0 0
  %2249 = vmatpush1.bf16.msra.mxu0 %v2226
  %2250 = vmatprep.subr.bf16.mxu0 0
  %2251 = vmatpush1.bf16.msra.mxu0 %v2227
  %2252 = vmatprep.subr.bf16.mxu0 0
  %2253 = vmatpush1.bf16.msra.mxu0 0
  %2254 = vmatprep.subr.bf16.mxu0 0
  %2255 = vmatpush1.bf16.msra.mxu0 0
  %2256 = vmatprep.subr.bf16.mxu0 0
  %2257 = vmatpush1.bf16.msra.mxu0 0
  %2258 = vmatprep.subr.bf16.mxu0 0
  %2259 = vmatpush1.bf16.msra.mxu0 0
  %2260 = vmatprep.subr.bf16.mxu0 0
  %2261 = vmatpush1.bf16.msra.mxu0 0
  %2262 = vmatprep.subr.bf16.mxu0 0
  %2263 = vmatpush1.bf16.msra.mxu0 0
  %2264 = vmatprep.subr.bf16.mxu0 0
  %2265 = vmatpush1.bf16.msra.mxu0 0
  %2266 = vmatprep.subr.bf16.mxu0 0
  %2267 = vmatpush1.bf16.msra.mxu0 0
  %2268 = vmatprep.mubr.bf16.mxu0 0
  %2269 = vmatmul.mubr.bf16.gmra.mrb[0].mxu0 %v2164
  %v2270 = vpop.f32.mrb[0].mxu0
  %v2271 = vadd.f32 %v2186, %v2270
  %v2272 = vpop.f32.mrb[0].mxu0
  %v2273 = vpop.f32.mrb[0].mxu0
  %v2274 = vpop.f32.mrb[0].mxu0
  %2275 = vdwg.mxu0
  %v2276 = vlaneseq
  %v2277 = vand.u32 %v2276, 127
  %vm2278 = vcmp.eq.s32.totalorder %v2277, 0
  %v2279 = vxor.u32 %v2271, 2147483648
  %v2280 = vmul.f32 %v2279, 1.442695
  %v2281 = vpow.pop %v2280
  %v2282 = vadd.f32 %v2281, 1.0
  %v2283 = vrcp.pop %v2282
  %v2284 = vmul.f32 1.0, %v2283
  %v2285 = vsel %vm2278, %v2284, %v2271
  %vm2286 = vcmask 58368
  %2287 = vst.msk [vmem:[%s17] sm:$0x3] %vm2286, %v2285
  // Predicated region
  $region70: #{rnet_forward.1} parent=0 // pred_check
    _
  $region71: #{rnet_forward.1} parent=0 // pred_check_branch
    %2289 = sbr.rel (0) target = $region73
  $region72: #{rnet_forward.1} parent=0 // pred_region
    _
  $region73: #{rnet_forward.1} parent=0 // pred_fallthru
    _
  // Predicated region
  $region74: #{rnet_forward.1} parent=0 // pred_check
    _
  $region75: #{rnet_forward.1} parent=0 // pred_check_branch
    %2291 = sbr.rel (0) target = $region77
  $region76: #{rnet_forward.1} parent=0 // pred_region
    _
  $region77: #{rnet_forward.1} parent=0 // pred_fallthru
    _

</llo_original>
